<compile_context>
chip_gen: v6e
topology: v6e:2x2x1
jax: 0.10.0
libtpu: 0.0.40
codegen_flags: <defaults>
</compile_context>

<pallas_src>
import functools

import jax
import jax.numpy as jnp
from jax import lax
from jax.experimental import pallas as pl
from jax.experimental.pallas import tpu as pltpu

EPS = 1e-5  # PyTorch LayerNorm default eps


# ----------------------------- Pallas kernel -------------------------------


def _layernorm(x, gamma, beta):
    mu = jnp.mean(x, axis=-1, keepdims=True)
    var = jnp.mean((x - mu) ** 2, axis=-1, keepdims=True)
    return (x - mu) * lax.rsqrt(var + EPS) * gamma + beta


def fused_transformer_kernel(
    # inputs (18)
    x_hbm_ref,                              # (B*N, D) f32 in HBM (pl.ANY), x + pos
    ln0_g_ref, ln0_b_ref,                   # (1,1,D) pre_norm
    wqkv_ref,                               # (1,D,3D) bf16, scale folded into Q cols
    wproj_ref, bproj_ref,                   # (1,D,D) bf16, (1,1,D)
    w1_ref, b1_ref,                         # (1,D,FF) bf16, (1,1,FF)
    ln1_g_ref, ln1_b_ref,                   # (1,1,D) norm1
    w2_ref, b2_ref,                         # (1,FF,D) bf16, (1,1,D)
    hln_g_ref, hln_b_ref,                   # (1,D)  final norm
    wpool_ref, bpool_ref,                   # (1,D), (1,1) attention_pool
    wfc_ref, bfc_ref,                       # (D,Cp) bf16, (1,Cp) fc (classes padded)
    # output
    out_ref,                                # (B, Cp) f32
    # scratch
    xs_ref,                                 # VMEM (B*N, D)  f32 residual stream
    qkv_ref,                                # VMEM (B*N, 3D) f32 fused QKV staging
    att_ref,                                # VMEM (B*N, D)  f32 per-head out staging
    *, batch, seq, num_heads,
):
    layer = pl.program_id(0)
    BN, D = xs_ref.shape
    hd = D // num_heads

    # ----- layer 0: DMA (x + pos_emb) from HBM into the residual scratch -----
    @pl.when(layer == 0)
    def _init():
        pltpu.sync_copy(x_hbm_ref, xs_ref)

    x = xs_ref[...]                                     # (B*N, D) f32

    # ---- attention branch: attn(pre_norm(x)) ----
    xn = _layernorm(x, ln0_g_ref[0], ln0_b_ref[0])      # f32
    # fused QKV projection: one lane-dense (BN, D) @ (D, 3D) matmul
    qkv_ref[...] = jnp.dot(xn.astype(jnp.bfloat16), wqkv_ref[0],
                           preferred_element_type=jnp.float32)

    # per-batch (N, N) score / softmax / PV; heads split only for the hd-contraction
    @pl.loop(0, batch)
    def _attn_batch(b):
        row = pl.multiple_of(b * seq, 8)
        for h in range(num_heads):                      # small static unroll
            q = qkv_ref[pl.ds(row, seq), pl.ds(h * hd, hd)].astype(jnp.bfloat16)
            k = qkv_ref[pl.ds(row, seq), pl.ds(D + h * hd, hd)].astype(jnp.bfloat16)
            v = qkv_ref[pl.ds(row, seq), pl.ds(2 * D + h * hd, hd)].astype(jnp.bfloat16)
            # scale already folded into the Q projection columns
            s = lax.dot_general(q, k, (((1,), (1,)), ((), ())),
                                preferred_element_type=jnp.float32)      # (N, N)
            s = s - jnp.max(s, axis=-1, keepdims=True)
            p = jnp.exp(s)
            p = p * pl.reciprocal(jnp.sum(p, axis=-1, keepdims=True), approx=True)
            o = jnp.dot(p.astype(jnp.bfloat16), v,
                        preferred_element_type=jnp.float32)              # (N, hd)
            att_ref[pl.ds(row, seq), pl.ds(h * hd, hd)] = o

    # single full-depth output projection (BN, D) @ (D, D)
    attn = jnp.dot(att_ref[...].astype(jnp.bfloat16), wproj_ref[0],
                   preferred_element_type=jnp.float32) + bproj_ref[0]
    src = x + attn

    # ---- norm1 + MLP (TransformerEncoderLayer: residual base is the *normed* src) ----
    src_n = _layernorm(src, ln1_g_ref[0], ln1_b_ref[0])
    h1 = jnp.dot(src_n.astype(jnp.bfloat16), w1_ref[0],
                 preferred_element_type=jnp.float32) + b1_ref[0]
    h1 = jnp.maximum(h1, 0.0)
    src2 = jnp.dot(h1.astype(jnp.bfloat16), w2_ref[0],
                   preferred_element_type=jnp.float32) + b2_ref[0]
    blk_out = src_n + src2

    # Outer residual from TransformerClassifier: x_new = x + blk(x)
    xs_ref[...] = x + blk_out

    # ----- last layer: fuse final norm + seq-pool + fc head (lane-dense, padded C) -----
    @pl.when(layer == pl.num_programs(0) - 1)
    def _head():
        xf = xs_ref[...].reshape(batch, seq, D)
        xn_h = _layernorm(xf, hln_g_ref[...], hln_b_ref[...])            # (B,N,D) f32
        scores = jnp.sum(xn_h * wpool_ref[...], axis=-1, keepdims=True) + bpool_ref[...]
        scores = scores - jnp.max(scores, axis=1, keepdims=True)
        w = jnp.exp(scores)
        w = w * pl.reciprocal(jnp.sum(w, axis=1, keepdims=True), approx=True)
        pooled = jnp.sum(w * xn_h, axis=1)                               # (B, D)
        out_ref[...] = jnp.dot(pooled.astype(jnp.bfloat16), wfc_ref[...],
                               preferred_element_type=jnp.float32) + bfc_ref[...]


# ------------------------------ wrapper ------------------------------------


def _const_spec(a):
    zeros = (0,) * a.ndim
    return pl.BlockSpec(a.shape, lambda l, _z=zeros: _z)


def _layer_spec(a):
    zeros = (0,) * (a.ndim - 1)
    return pl.BlockSpec((1,) + a.shape[1:], lambda l, _z=zeros: (l,) + _z)


def transformer_classifier_forward(x, pos_emb, layer_arrays, head_arrays,
                                   num_heads, num_classes):
    B, N, D = x.shape
    L = layer_arrays[0].shape[0]
    Cp = head_arrays[-1].shape[-1]
    assert N % 8 == 0, "sequence length must be a multiple of 8 (f32 sublane tiling)"
    assert D % 128 == 0, "embedding dim must be lane-dense (multiple of 128)"
    assert D % num_heads == 0

    # pos-emb add (dropout = eval identity) done once in the wrapper; the flattened
    # (B*N, D) activation is left in HBM and DMA'd into the residual scratch at layer 0.
    x0 = (x + pos_emb).reshape(B * N, D).astype(jnp.float32)

    kernel = functools.partial(fused_transformer_kernel,
                               batch=B, seq=N, num_heads=num_heads)

    grid_spec = pltpu.PrefetchScalarGridSpec(
        num_scalar_prefetch=0,
        grid=(L,),
        in_specs=[pl.BlockSpec(memory_space=pl.ANY)]            # activation stays in HBM
        + [_layer_spec(a) for a in layer_arrays]                # layer-streamed weights
        + [_const_spec(a) for a in head_arrays],                # tiny head params
        out_specs=pl.BlockSpec((B, Cp), lambda l: (0, 0)),
        scratch_shapes=[
            pltpu.VMEM((B * N, D), jnp.float32),        # residual stream (f32 for accuracy)
            pltpu.VMEM((B * N, 3 * D), jnp.float32),    # fused QKV staging
            pltpu.VMEM((B * N, D), jnp.float32),        # per-head attention-out staging
        ],
    )
    out = pl.pallas_call(
        kernel,
        out_shape=jax.ShapeDtypeStruct((B, Cp), jnp.float32),
        grid_spec=grid_spec,
        compiler_params=pltpu.CompilerParams(
            dimension_semantics=("arbitrary",),          # carried state across layers
            # 48 MiB fits v5e/v6e/v7x; per-generation tuning (96-112 MiB + Buffered(3)
            # on v5e/v6e, FF tiling + parallel batch axis on v7x) left as knobs.
            vmem_limit_bytes=48 * 1024 * 1024,
        ),
    )(x0, *layer_arrays, *head_arrays)
    return out[:, :num_classes]


# --------------------------- parameter creation -----------------------------


def trunc_normal(key, shape, std):
    return std * jax.random.truncated_normal(key, -2.0, 2.0, shape, jnp.float32)


def make_params(key, *, d_model, num_heads, dim_feedforward, num_layers, num_classes, seq_len):
    """PyTorch-layout params (Linear weights stored transposed as (in, out))."""
    keys = iter(jax.random.split(key, 8 * num_layers + 8))
    pos_emb = trunc_normal(next(keys), (1, seq_len, d_model), 0.2)

    block_params = []
    for _ in range(num_layers):
        ln0_g = jnp.ones((1, d_model), jnp.float32)
        ln0_b = jnp.zeros((1, d_model), jnp.float32)
        wqkv = trunc_normal(next(keys), (d_model, 3 * d_model), 0.02)
        wproj = trunc_normal(next(keys), (d_model, d_model), 0.02)
        bproj = jnp.zeros((1, d_model), jnp.float32)
        w1 = trunc_normal(next(keys), (d_model, dim_feedforward), 0.02)
        b1 = jnp.zeros((1, dim_feedforward), jnp.float32)
        ln1_g = jnp.ones((1, d_model), jnp.float32)
        ln1_b = jnp.zeros((1, d_model), jnp.float32)
        w2 = trunc_normal(next(keys), (dim_feedforward, d_model), 0.02)
        b2 = jnp.zeros((1, d_model), jnp.float32)
        block_params.append(
            (ln0_g, ln0_b, wqkv, wproj, bproj, w1, b1, ln1_g, ln1_b, w2, b2))

    ln_g = jnp.ones((1, d_model), jnp.float32)
    ln_b = jnp.zeros((1, d_model), jnp.float32)
    wpool = trunc_normal(next(keys), (1, d_model), 0.02)   # attention_pool weight (1, D)
    bpool = jnp.zeros((1, 1), jnp.float32)
    wfc = trunc_normal(next(keys), (d_model, num_classes), 0.02)
    bfc = jnp.zeros((1, num_classes), jnp.float32)
    head_params = (ln_g, ln_b, wpool, bpool, wfc, bfc)
    return pos_emb, block_params, head_params


def prepare_fused_params(block_params, head_params, num_heads):
    """One-time transform: stack layers, fold 1/sqrt(head_dim) into the Q columns of
    the fused QKV weight, cast matmul weights to bf16, pad fc to a lane-dense width."""
    L = len(block_params)

    def stack(i):
        return jnp.stack([p[i] for p in block_params], axis=0)

    ln0_g, ln0_b = stack(0), stack(1)
    wqkv, wproj, bproj = stack(2), stack(3), stack(4)
    w1, b1 = stack(5), stack(6)
    ln1_g, ln1_b = stack(7), stack(8)
    w2, b2 = stack(9), stack(10)

    D = wqkv.shape[1]
    hd = D // num_heads
    scale = hd ** -0.5
    wqkv = wqkv.at[:, :, :D].multiply(scale)       # fold attention scale into Q columns

    bf = lambda a: a.astype(jnp.bfloat16)
    layer_arrays = [ln0_g, ln0_b, bf(wqkv), bf(wproj), bproj,
                    bf(w1), b1, ln1_g, ln1_b, bf(w2), b2]

    ln_g, ln_b, wpool, bpool, wfc, bfc = head_params
    C = wfc.shape[1]
    Cp = ((C + 127) // 128) * 128                  # lane-dense padded class dim
    wfc_p = jnp.zeros((D, Cp), jnp.float32).at[:, :C].set(wfc).astype(jnp.bfloat16)
    bfc_p = jnp.zeros((1, Cp), jnp.float32).at[:, :C].set(bfc)
    head_arrays = [ln_g, ln_b, wpool, bpool, wfc_p, bfc_p]
    return layer_arrays, head_arrays


# ------------------------------ pure-JAX ref ---------------------------------


def reference_forward(x, pos_emb, block_params, head_params, num_heads):
    def ln(x, g, b):
        mu = jnp.mean(x, -1, keepdims=True)
        var = jnp.mean((x - mu) ** 2, -1, keepdims=True)
        return (x - mu) / jnp.sqrt(var + EPS) * g + b

    x = x + pos_emb
    B, N, D = x.shape
    hd = D // num_heads
    for (ln0_g, ln0_b, wqkv, wproj, bproj, w1, b1, ln1_g, ln1_b, w2, b2) in block_params:
        xn = ln(x, ln0_g[0], ln0_b[0])
        qkv = xn @ wqkv
        q = qkv[..., :D].reshape(B, N, num_heads, hd).transpose(0, 2, 1, 3)
        k = qkv[..., D:2 * D].reshape(B, N, num_heads, hd).transpose(0, 2, 1, 3)
        v = qkv[..., 2 * D:].reshape(B, N, num_heads, hd).transpose(0, 2, 1, 3)
        s = jnp.einsum("bhqd,bhkd->bhqk", q, k) * hd ** -0.5
        p = jax.nn.softmax(s, axis=-1)
        a = jnp.einsum("bhqk,bhkd->bhqd", p, v).transpose(0, 2, 1, 3).reshape(B, N, D)
        a = a @ wproj + bproj[0]
        src = x + a
        src_n = ln(src, ln1_g[0], ln1_b[0])
        src2 = jnp.maximum(src_n @ w1 + b1[0], 0.0) @ w2 + b2[0]
        x = x + (src_n + src2)
    ln_g, ln_b, wpool, bpool, wfc, bfc = head_params
    xn = ln(x, ln_g[0], ln_b[0])
    scores = jnp.sum(xn * wpool[0], -1, keepdims=True) + bpool[0, 0]
    w = jax.nn.softmax(scores, axis=1)
    pooled = jnp.sum(w * xn, axis=1)
    return pooled @ wfc + bfc[0]


# --------------------------------- main --------------------------------------


if __name__ == "__main__":
    # Small, self-consistent hyperparameters (D lane-dense: multiple of 128; N % 8 == 0).
    B, N, D = 2, 8, 128
    num_heads = 4
    num_layers = 2
    mlp_ratio = 2.0
    dim_feedforward = int(D * mlp_ratio)
    num_classes = 16

    key = jax.random.PRNGKey(0)
    kp, kx = jax.random.split(key)
    pos_emb, block_params, head_params = make_params(
        kp, d_model=D, num_heads=num_heads, dim_feedforward=dim_feedforward,
        num_layers=num_layers, num_classes=num_classes, seq_len=N)

    # One-time parameter preparation (stacking / scale fold / bf16 cast / fc lane-pad).
    layer_arrays, head_arrays = prepare_fused_params(block_params, head_params, num_heads)

    x = jax.random.normal(kx, (B, N, D), jnp.float32)

    # TODO(synk): Dropout / DropPath / attention-dropout are eval-mode identities;
    #             seq_pool=False (class token) and sine/'none' positional-embedding
    #             branches of the PyTorch module are not implemented.
    logits = transformer_classifier_forward(
        x, pos_emb, layer_arrays, head_arrays, num_heads, num_classes)
    logits = jax.block_until_ready(logits)

    ref = reference_forward(x, pos_emb, block_params, head_params, num_heads)
    assert logits.shape == (B, num_classes)
    abs_err = float(jnp.max(jnp.abs(logits - ref)))
    rel_err = float(jnp.max(jnp.abs(logits - ref) / (jnp.abs(ref) + 1e-2)))
    assert abs_err < 2e-2 and rel_err < 0.1, (
        f"mismatch vs pure-JAX f32 reference: abs={abs_err:.2e} rel={rel_err:.2e}")

    print("KERNEL_OK")
</pallas_src>

<mosaic_0001>
module attributes {stable_mosaic.version = 11 : i64} {
  func.func @fused_transformer_kernel(%arg0: i32, %arg1: memref<16x128xf32, #tpu.memory_space<any>>, %arg2: memref<1x1x128xf32, #tpu.memory_space<vmem>>, %arg3: memref<1x1x128xf32, #tpu.memory_space<vmem>>, %arg4: memref<1x128x384xbf16, #tpu.memory_space<vmem>>, %arg5: memref<1x128x128xbf16, #tpu.memory_space<vmem>>, %arg6: memref<1x1x128xf32, #tpu.memory_space<vmem>>, %arg7: memref<1x128x256xbf16, #tpu.memory_space<vmem>>, %arg8: memref<1x1x256xf32, #tpu.memory_space<vmem>>, %arg9: memref<1x1x128xf32, #tpu.memory_space<vmem>>, %arg10: memref<1x1x128xf32, #tpu.memory_space<vmem>>, %arg11: memref<1x256x128xbf16, #tpu.memory_space<vmem>>, %arg12: memref<1x1x128xf32, #tpu.memory_space<vmem>>, %arg13: memref<1x128xf32, #tpu.memory_space<vmem>>, %arg14: memref<1x128xf32, #tpu.memory_space<vmem>>, %arg15: memref<1x128xf32, #tpu.memory_space<vmem>>, %arg16: memref<1x1xf32, #tpu.memory_space<vmem>>, %arg17: memref<128x128xbf16, #tpu.memory_space<vmem>>, %arg18: memref<1x128xf32, #tpu.memory_space<vmem>>, %arg19: memref<2x128xf32, #tpu.memory_space<vmem>>, %arg20: memref<16x128xf32, #tpu.memory_space<vmem>>, %arg21: memref<16x384xf32, #tpu.memory_space<vmem>>, %arg22: memref<16x128xf32, #tpu.memory_space<vmem>>) attributes {dimension_semantics = [#tpu.dimension_semantics<arbitrary>], iteration_bounds = array<i64: 2>, scalar_prefetch = 0 : i64, scratch_operands = 3 : i64, tpu.core_type = #tpu.core_type<tc>, window_params = [{}, {transform_indices = @transform_1, window_bounds = array<i64: 1, 1, 128>}, {transform_indices = @transform_2, window_bounds = array<i64: 1, 1, 128>}, {transform_indices = @transform_3, window_bounds = array<i64: 1, 128, 384>}, {transform_indices = @transform_4, window_bounds = array<i64: 1, 128, 128>}, {transform_indices = @transform_5, window_bounds = array<i64: 1, 1, 128>}, {transform_indices = @transform_6, window_bounds = array<i64: 1, 128, 256>}, {transform_indices = @transform_7, window_bounds = array<i64: 1, 1, 256>}, {transform_indices = @transform_8, window_bounds = array<i64: 1, 1, 128>}, {transform_indices = @transform_9, window_bounds = array<i64: 1, 1, 128>}, {transform_indices = @transform_10, window_bounds = array<i64: 1, 256, 128>}, {transform_indices = @transform_11, window_bounds = array<i64: 1, 1, 128>}, {pipeline_mode = #tpu.pipeline_mode<synchronous>, transform_indices = @transform_12, window_bounds = array<i64: 1, 128>}, {pipeline_mode = #tpu.pipeline_mode<synchronous>, transform_indices = @transform_13, window_bounds = array<i64: 1, 128>}, {pipeline_mode = #tpu.pipeline_mode<synchronous>, transform_indices = @transform_14, window_bounds = array<i64: 1, 128>}, {pipeline_mode = #tpu.pipeline_mode<synchronous>, transform_indices = @transform_15, window_bounds = array<i64: 1, 1>}, {pipeline_mode = #tpu.pipeline_mode<synchronous>, transform_indices = @transform_16, window_bounds = array<i64: 128, 128>}, {pipeline_mode = #tpu.pipeline_mode<synchronous>, transform_indices = @transform_17, window_bounds = array<i64: 1, 128>}, {pipeline_mode = #tpu.pipeline_mode<synchronous>, transform_indices = @transform_18, window_bounds = array<i64: 2, 128>}]} {
    %c0_i32 = arith.constant 0 : i32
    %0 = arith.cmpi eq, %arg0, %c0_i32 : i32
    %1 = arith.extui %0 : i1 to i32
    %c0_i32_0 = arith.constant 0 : i32
    %2 = arith.cmpi ne, %1, %c0_i32_0 : i32
    scf.if %2 {
      "tpu.region"() ({
        %96 = tpu.sem_alloc : memref<!tpu.dma_semaphore, #tpu.memory_space<semaphore_mem>>
        tpu.enqueue_dma source(%arg1 : memref<16x128xf32, #tpu.memory_space<any>>) target(%arg20 : memref<16x128xf32, #tpu.memory_space<vmem>>) target_semaphore(%96 : memref<!tpu.dma_semaphore, #tpu.memory_space<semaphore_mem>>)
        tpu.wait_dma2 semaphore(%96 : memref<!tpu.dma_semaphore, #tpu.memory_space<semaphore_mem>>) src(%arg1 : memref<16x128xf32, #tpu.memory_space<any>>) dst(%arg20 : memref<16x128xf32, #tpu.memory_space<vmem>>)
        tpu.yield
      }) : () -> ()
    } else {
    }
    %c0 = arith.constant 0 : index
    %c0_1 = arith.constant 0 : index
    %3 = vector.load %arg20[%c0, %c0_1] : memref<16x128xf32, #tpu.memory_space<vmem>>, vector<16x128xf32>
    %c0_2 = arith.constant 0 : index
    %c0_3 = arith.constant 0 : index
    %c0_4 = arith.constant 0 : index
    %4 = vector.load %arg2[%c0_2, %c0_3, %c0_4] : memref<1x1x128xf32, #tpu.memory_space<vmem>>, vector<1x1x128xf32>
    %5 = vector.shape_cast %4 : vector<1x1x128xf32> to vector<1x128xf32>
    %c0_5 = arith.constant 0 : index
    %c0_6 = arith.constant 0 : index
    %c0_7 = arith.constant 0 : index
    %6 = vector.load %arg3[%c0_5, %c0_6, %c0_7] : memref<1x1x128xf32, #tpu.memory_space<vmem>>, vector<1x1x128xf32>
    %7 = vector.shape_cast %6 : vector<1x1x128xf32> to vector<1x128xf32>
    %cst = arith.constant dense<0.000000e+00> : vector<16xf32>
    %8 = vector.multi_reduction <add>, %3, %cst [1] : vector<16x128xf32> to vector<16xf32>
    %9 = vector.shape_cast %8 : vector<16xf32> to vector<16x1xf32>
    %cst_8 = arith.constant 1.280000e+02 : f32
    %10 = vector.broadcast %cst_8 : f32 to vector<16x1xf32>
    %11 = arith.divf %9, %10 : vector<16x1xf32>
    %12 = vector.broadcast %11 : vector<16x1xf32> to vector<16x128xf32>
    %13 = arith.subf %3, %12 : vector<16x128xf32>
    %14 = arith.mulf %13, %13 : vector<16x128xf32>
    %cst_9 = arith.constant dense<0.000000e+00> : vector<16xf32>
    %15 = vector.multi_reduction <add>, %14, %cst_9 [1] : vector<16x128xf32> to vector<16xf32>
    %16 = vector.shape_cast %15 : vector<16xf32> to vector<16x1xf32>
    %cst_10 = arith.constant 1.280000e+02 : f32
    %17 = vector.broadcast %cst_10 : f32 to vector<16x1xf32>
    %18 = arith.divf %16, %17 : vector<16x1xf32>
    %19 = vector.broadcast %11 : vector<16x1xf32> to vector<16x128xf32>
    %20 = arith.subf %3, %19 : vector<16x128xf32>
    %cst_11 = arith.constant 9.99999974E-6 : f32
    %21 = vector.broadcast %cst_11 : f32 to vector<16x1xf32>
    %22 = arith.addf %18, %21 : vector<16x1xf32>
    %23 = math.rsqrt %22 : vector<16x1xf32>
    %24 = vector.broadcast %23 : vector<16x1xf32> to vector<16x128xf32>
    %25 = arith.mulf %20, %24 : vector<16x128xf32>
    %26 = vector.broadcast %5 : vector<1x128xf32> to vector<16x128xf32>
    %27 = arith.mulf %25, %26 : vector<16x128xf32>
    %28 = vector.broadcast %7 : vector<1x128xf32> to vector<16x128xf32>
    %29 = arith.addf %27, %28 : vector<16x128xf32>
    %30 = arith.truncf %29 : vector<16x128xf32> to vector<16x128xbf16>
    %c0_12 = arith.constant 0 : index
    %c0_13 = arith.constant 0 : index
    %c0_14 = arith.constant 0 : index
    %31 = vector.load %arg4[%c0_12, %c0_13, %c0_14] : memref<1x128x384xbf16, #tpu.memory_space<vmem>>, vector<1x128x384xbf16>
    %32 = vector.shape_cast %31 : vector<1x128x384xbf16> to vector<128x384xbf16>
    %cst_15 = arith.constant dense<0.000000e+00> : vector<16x384xf32>
    %33 = tpu.matmul %30, %32, %cst_15 {dimension_numbers = #tpu.dot_dimension_numbers<[1], [0], [0], [1], [0, 0, 1, 1], [], []>} : vector<16x128xbf16>, vector<128x384xbf16>, vector<16x384xf32> -> vector<16x384xf32>
    %c0_16 = arith.constant 0 : index
    %c0_17 = arith.constant 0 : index
    %34 = vector.load %arg21[%c0_16, %c0_17] : memref<16x384xf32, #tpu.memory_space<vmem>>, vector<16x384xf32>
    tpu.vector_store %arg21[%c0_16, %c0_17], %33 {strides = array<i32>} : memref<16x384xf32, #tpu.memory_space<vmem>>, vector<16x384xf32>,
    %c0_i32_18 = arith.constant 0 : i32
    %c2_i32 = arith.constant 2 : i32
    %35 = arith.addi %c0_i32_18, %c2_i32 : i32
    %c1_i32 = arith.constant 1 : i32
    scf.for %arg23 = %c0_i32_18 to %35 step %c1_i32  : i32 {
      %c1_i32_59 = arith.constant 1 : i32
      %96 = arith.muli %arg23, %c1_i32_59 : i32
      %c0_i32_60 = arith.constant 0 : i32
      %97 = arith.addi %c0_i32_60, %96 : i32
      %c8_i32 = arith.constant 8 : i32
      %98 = arith.muli %97, %c8_i32 : i32
      %99 = tpu.assume_multiple %98, 8 : i32
      %100 = arith.index_cast %99 : i32 to index
      %c0_61 = arith.constant 0 : index
      %101 = vector.load %arg21[%100, %c0_61] : memref<16x384xf32, #tpu.memory_space<vmem>>, vector<8x32xf32>
      %102 = arith.truncf %101 : vector<8x32xf32> to vector<8x32xbf16>
      %103 = arith.index_cast %99 : i32 to index
      %c128 = arith.constant 128 : index
      %104 = vector.load %arg21[%103, %c128] : memref<16x384xf32, #tpu.memory_space<vmem>>, vector<8x32xf32>
      %105 = arith.truncf %104 : vector<8x32xf32> to vector<8x32xbf16>
      %106 = arith.index_cast %99 : i32 to index
      %c256 = arith.constant 256 : index
      %107 = vector.load %arg21[%106, %c256] : memref<16x384xf32, #tpu.memory_space<vmem>>, vector<8x32xf32>
      %108 = arith.truncf %107 : vector<8x32xf32> to vector<8x32xbf16>
      %cst_62 = arith.constant dense<0.000000e+00> : vector<8x8xf32>
      %109 = tpu.matmul %102, %105, %cst_62 {dimension_numbers = #tpu.dot_dimension_numbers<[1], [1], [0], [0], [0, 0, 1, 0], [], []>} : vector<8x32xbf16>, vector<8x32xbf16>, vector<8x8xf32> -> vector<8x8xf32>
      %cst_63 = arith.constant dense<0xFF800000> : vector<8xf32>
      %110 = vector.multi_reduction <maximumf>, %109, %cst_63 [1] : vector<8x8xf32> to vector<8xf32>
      %111 = vector.shape_cast %110 : vector<8xf32> to vector<8x1xf32>
      %112 = vector.broadcast %111 : vector<8x1xf32> to vector<8x8xf32>
      %113 = arith.subf %109, %112 : vector<8x8xf32>
      %114 = math.exp %113 : vector<8x8xf32>
      %cst_64 = arith.constant dense<0.000000e+00> : vector<8xf32>
      %115 = vector.multi_reduction <add>, %114, %cst_64 [1] : vector<8x8xf32> to vector<8xf32>
      %116 = vector.shape_cast %115 : vector<8xf32> to vector<8x1xf32>
      %117 = tpu.reciprocal %116 {approx = true} : vector<8x1xf32> -> vector<8x1xf32>
      %118 = vector.broadcast %117 : vector<8x1xf32> to vector<8x8xf32>
      %119 = arith.mulf %114, %118 : vector<8x8xf32>
      %120 = arith.truncf %119 : vector<8x8xf32> to vector<8x8xbf16>
      %cst_65 = arith.constant dense<0.000000e+00> : vector<8x32xf32>
      %121 = tpu.matmul %120, %108, %cst_65 {dimension_numbers = #tpu.dot_dimension_numbers<[1], [0], [0], [1], [0, 0, 1, 1], [], []>} : vector<8x8xbf16>, vector<8x32xbf16>, vector<8x32xf32> -> vector<8x32xf32>
      %122 = arith.index_cast %99 : i32 to index
      %c0_66 = arith.constant 0 : index
      %123 = vector.load %arg22[%122, %c0_66] : memref<16x128xf32, #tpu.memory_space<vmem>>, vector<8x32xf32>
      tpu.vector_store %arg22[%122, %c0_66], %121 {strides = array<i32>} : memref<16x128xf32, #tpu.memory_space<vmem>>, vector<8x32xf32>,
      %124 = arith.index_cast %99 : i32 to index
      %c32 = arith.constant 32 : index
      %125 = vector.load %arg21[%124, %c32] : memref<16x384xf32, #tpu.memory_space<vmem>>, vector<8x32xf32>
      %126 = arith.truncf %125 : vector<8x32xf32> to vector<8x32xbf16>
      %127 = arith.index_cast %99 : i32 to index
      %c160 = arith.constant 160 : index
      %128 = vector.load %arg21[%127, %c160] : memref<16x384xf32, #tpu.memory_space<vmem>>, vector<8x32xf32>
      %129 = arith.truncf %128 : vector<8x32xf32> to vector<8x32xbf16>
      %130 = arith.index_cast %99 : i32 to index
      %c288 = arith.constant 288 : index
      %131 = vector.load %arg21[%130, %c288] : memref<16x384xf32, #tpu.memory_space<vmem>>, vector<8x32xf32>
      %132 = arith.truncf %131 : vector<8x32xf32> to vector<8x32xbf16>
      %cst_67 = arith.constant dense<0.000000e+00> : vector<8x8xf32>
      %133 = tpu.matmul %126, %129, %cst_67 {dimension_numbers = #tpu.dot_dimension_numbers<[1], [1], [0], [0], [0, 0, 1, 0], [], []>} : vector<8x32xbf16>, vector<8x32xbf16>, vector<8x8xf32> -> vector<8x8xf32>
      %cst_68 = arith.constant dense<0xFF800000> : vector<8xf32>
      %134 = vector.multi_reduction <maximumf>, %133, %cst_68 [1] : vector<8x8xf32> to vector<8xf32>
      %135 = vector.shape_cast %134 : vector<8xf32> to vector<8x1xf32>
      %136 = vector.broadcast %135 : vector<8x1xf32> to vector<8x8xf32>
      %137 = arith.subf %133, %136 : vector<8x8xf32>
      %138 = math.exp %137 : vector<8x8xf32>
      %cst_69 = arith.constant dense<0.000000e+00> : vector<8xf32>
      %139 = vector.multi_reduction <add>, %138, %cst_69 [1] : vector<8x8xf32> to vector<8xf32>
      %140 = vector.shape_cast %139 : vector<8xf32> to vector<8x1xf32>
      %141 = tpu.reciprocal %140 {approx = true} : vector<8x1xf32> -> vector<8x1xf32>
      %142 = vector.broadcast %141 : vector<8x1xf32> to vector<8x8xf32>
      %143 = arith.mulf %138, %142 : vector<8x8xf32>
      %144 = arith.truncf %143 : vector<8x8xf32> to vector<8x8xbf16>
      %cst_70 = arith.constant dense<0.000000e+00> : vector<8x32xf32>
      %145 = tpu.matmul %144, %132, %cst_70 {dimension_numbers = #tpu.dot_dimension_numbers<[1], [0], [0], [1], [0, 0, 1, 1], [], []>} : vector<8x8xbf16>, vector<8x32xbf16>, vector<8x32xf32> -> vector<8x32xf32>
      %146 = arith.index_cast %99 : i32 to index
      %c32_71 = arith.constant 32 : index
      %147 = vector.load %arg22[%146, %c32_71] : memref<16x128xf32, #tpu.memory_space<vmem>>, vector<8x32xf32>
      tpu.vector_store %arg22[%146, %c32_71], %145 {strides = array<i32>} : memref<16x128xf32, #tpu.memory_space<vmem>>, vector<8x32xf32>,
      %148 = arith.index_cast %99 : i32 to index
      %c64 = arith.constant 64 : index
      %149 = vector.load %arg21[%148, %c64] : memref<16x384xf32, #tpu.memory_space<vmem>>, vector<8x32xf32>
      %150 = arith.truncf %149 : vector<8x32xf32> to vector<8x32xbf16>
      %151 = arith.index_cast %99 : i32 to index
      %c192 = arith.constant 192 : index
      %152 = vector.load %arg21[%151, %c192] : memref<16x384xf32, #tpu.memory_space<vmem>>, vector<8x32xf32>
      %153 = arith.truncf %152 : vector<8x32xf32> to vector<8x32xbf16>
      %154 = arith.index_cast %99 : i32 to index
      %c320 = arith.constant 320 : index
      %155 = vector.load %arg21[%154, %c320] : memref<16x384xf32, #tpu.memory_space<vmem>>, vector<8x32xf32>
      %156 = arith.truncf %155 : vector<8x32xf32> to vector<8x32xbf16>
      %cst_72 = arith.constant dense<0.000000e+00> : vector<8x8xf32>
      %157 = tpu.matmul %150, %153, %cst_72 {dimension_numbers = #tpu.dot_dimension_numbers<[1], [1], [0], [0], [0, 0, 1, 0], [], []>} : vector<8x32xbf16>, vector<8x32xbf16>, vector<8x8xf32> -> vector<8x8xf32>
      %cst_73 = arith.constant dense<0xFF800000> : vector<8xf32>
      %158 = vector.multi_reduction <maximumf>, %157, %cst_73 [1] : vector<8x8xf32> to vector<8xf32>
      %159 = vector.shape_cast %158 : vector<8xf32> to vector<8x1xf32>
      %160 = vector.broadcast %159 : vector<8x1xf32> to vector<8x8xf32>
      %161 = arith.subf %157, %160 : vector<8x8xf32>
      %162 = math.exp %161 : vector<8x8xf32>
      %cst_74 = arith.constant dense<0.000000e+00> : vector<8xf32>
      %163 = vector.multi_reduction <add>, %162, %cst_74 [1] : vector<8x8xf32> to vector<8xf32>
      %164 = vector.shape_cast %163 : vector<8xf32> to vector<8x1xf32>
      %165 = tpu.reciprocal %164 {approx = true} : vector<8x1xf32> -> vector<8x1xf32>
      %166 = vector.broadcast %165 : vector<8x1xf32> to vector<8x8xf32>
      %167 = arith.mulf %162, %166 : vector<8x8xf32>
      %168 = arith.truncf %167 : vector<8x8xf32> to vector<8x8xbf16>
      %cst_75 = arith.constant dense<0.000000e+00> : vector<8x32xf32>
      %169 = tpu.matmul %168, %156, %cst_75 {dimension_numbers = #tpu.dot_dimension_numbers<[1], [0], [0], [1], [0, 0, 1, 1], [], []>} : vector<8x8xbf16>, vector<8x32xbf16>, vector<8x32xf32> -> vector<8x32xf32>
      %170 = arith.index_cast %99 : i32 to index
      %c64_76 = arith.constant 64 : index
      %171 = vector.load %arg22[%170, %c64_76] : memref<16x128xf32, #tpu.memory_space<vmem>>, vector<8x32xf32>
      tpu.vector_store %arg22[%170, %c64_76], %169 {strides = array<i32>} : memref<16x128xf32, #tpu.memory_space<vmem>>, vector<8x32xf32>,
      %172 = arith.index_cast %99 : i32 to index
      %c96 = arith.constant 96 : index
      %173 = vector.load %arg21[%172, %c96] : memref<16x384xf32, #tpu.memory_space<vmem>>, vector<8x32xf32>
      %174 = arith.truncf %173 : vector<8x32xf32> to vector<8x32xbf16>
      %175 = arith.index_cast %99 : i32 to index
      %c224 = arith.constant 224 : index
      %176 = vector.load %arg21[%175, %c224] : memref<16x384xf32, #tpu.memory_space<vmem>>, vector<8x32xf32>
      %177 = arith.truncf %176 : vector<8x32xf32> to vector<8x32xbf16>
      %178 = arith.index_cast %99 : i32 to index
      %c352 = arith.constant 352 : index
      %179 = vector.load %arg21[%178, %c352] : memref<16x384xf32, #tpu.memory_space<vmem>>, vector<8x32xf32>
      %180 = arith.truncf %179 : vector<8x32xf32> to vector<8x32xbf16>
      %cst_77 = arith.constant dense<0.000000e+00> : vector<8x8xf32>
      %181 = tpu.matmul %174, %177, %cst_77 {dimension_numbers = #tpu.dot_dimension_numbers<[1], [1], [0], [0], [0, 0, 1, 0], [], []>} : vector<8x32xbf16>, vector<8x32xbf16>, vector<8x8xf32> -> vector<8x8xf32>
      %cst_78 = arith.constant dense<0xFF800000> : vector<8xf32>
      %182 = vector.multi_reduction <maximumf>, %181, %cst_78 [1] : vector<8x8xf32> to vector<8xf32>
      %183 = vector.shape_cast %182 : vector<8xf32> to vector<8x1xf32>
      %184 = vector.broadcast %183 : vector<8x1xf32> to vector<8x8xf32>
      %185 = arith.subf %181, %184 : vector<8x8xf32>
      %186 = math.exp %185 : vector<8x8xf32>
      %cst_79 = arith.constant dense<0.000000e+00> : vector<8xf32>
      %187 = vector.multi_reduction <add>, %186, %cst_79 [1] : vector<8x8xf32> to vector<8xf32>
      %188 = vector.shape_cast %187 : vector<8xf32> to vector<8x1xf32>
      %189 = tpu.reciprocal %188 {approx = true} : vector<8x1xf32> -> vector<8x1xf32>
      %190 = vector.broadcast %189 : vector<8x1xf32> to vector<8x8xf32>
      %191 = arith.mulf %186, %190 : vector<8x8xf32>
      %192 = arith.truncf %191 : vector<8x8xf32> to vector<8x8xbf16>
      %cst_80 = arith.constant dense<0.000000e+00> : vector<8x32xf32>
      %193 = tpu.matmul %192, %180, %cst_80 {dimension_numbers = #tpu.dot_dimension_numbers<[1], [0], [0], [1], [0, 0, 1, 1], [], []>} : vector<8x8xbf16>, vector<8x32xbf16>, vector<8x32xf32> -> vector<8x32xf32>
      %194 = arith.index_cast %99 : i32 to index
      %c96_81 = arith.constant 96 : index
      %195 = vector.load %arg22[%194, %c96_81] : memref<16x128xf32, #tpu.memory_space<vmem>>, vector<8x32xf32>
      tpu.vector_store %arg22[%194, %c96_81], %193 {strides = array<i32>} : memref<16x128xf32, #tpu.memory_space<vmem>>, vector<8x32xf32>,
    }
    %c2_i32_19 = arith.constant 2 : i32
    %c0_20 = arith.constant 0 : index
    %c0_21 = arith.constant 0 : index
    %36 = vector.load %arg22[%c0_20, %c0_21] : memref<16x128xf32, #tpu.memory_space<vmem>>, vector<16x128xf32>
    %37 = arith.truncf %36 : vector<16x128xf32> to vector<16x128xbf16>
    %c0_22 = arith.constant 0 : index
    %c0_23 = arith.constant 0 : index
    %c0_24 = arith.constant 0 : index
    %38 = vector.load %arg5[%c0_22, %c0_23, %c0_24] : memref<1x128x128xbf16, #tpu.memory_space<vmem>>, vector<1x128x128xbf16>
    %39 = vector.shape_cast %38 : vector<1x128x128xbf16> to vector<128x128xbf16>
    %cst_25 = arith.constant dense<0.000000e+00> : vector<16x128xf32>
    %40 = tpu.matmul %37, %39, %cst_25 {dimension_numbers = #tpu.dot_dimension_numbers<[1], [0], [0], [1], [0, 0, 1, 1], [], []>} : vector<16x128xbf16>, vector<128x128xbf16>, vector<16x128xf32> -> vector<16x128xf32>
    %c0_26 = arith.constant 0 : index
    %c0_27 = arith.constant 0 : index
    %c0_28 = arith.constant 0 : index
    %41 = vector.load %arg6[%c0_26, %c0_27, %c0_28] : memref<1x1x128xf32, #tpu.memory_space<vmem>>, vector<1x1x128xf32>
    %42 = vector.shape_cast %41 : vector<1x1x128xf32> to vector<1x128xf32>
    %43 = vector.broadcast %42 : vector<1x128xf32> to vector<16x128xf32>
    %44 = arith.addf %40, %43 : vector<16x128xf32>
    %45 = arith.addf %3, %44 : vector<16x128xf32>
    %c0_29 = arith.constant 0 : index
    %c0_30 = arith.constant 0 : index
    %c0_31 = arith.constant 0 : index
    %46 = vector.load %arg9[%c0_29, %c0_30, %c0_31] : memref<1x1x128xf32, #tpu.memory_space<vmem>>, vector<1x1x128xf32>
    %47 = vector.shape_cast %46 : vector<1x1x128xf32> to vector<1x128xf32>
    %c0_32 = arith.constant 0 : index
    %c0_33 = arith.constant 0 : index
    %c0_34 = arith.constant 0 : index
    %48 = vector.load %arg10[%c0_32, %c0_33, %c0_34] : memref<1x1x128xf32, #tpu.memory_space<vmem>>, vector<1x1x128xf32>
    %49 = vector.shape_cast %48 : vector<1x1x128xf32> to vector<1x128xf32>
    %cst_35 = arith.constant dense<0.000000e+00> : vector<16xf32>
    %50 = vector.multi_reduction <add>, %45, %cst_35 [1] : vector<16x128xf32> to vector<16xf32>
    %51 = vector.shape_cast %50 : vector<16xf32> to vector<16x1xf32>
    %cst_36 = arith.constant 1.280000e+02 : f32
    %52 = vector.broadcast %cst_36 : f32 to vector<16x1xf32>
    %53 = arith.divf %51, %52 : vector<16x1xf32>
    %54 = vector.broadcast %53 : vector<16x1xf32> to vector<16x128xf32>
    %55 = arith.subf %45, %54 : vector<16x128xf32>
    %56 = arith.mulf %55, %55 : vector<16x128xf32>
    %cst_37 = arith.constant dense<0.000000e+00> : vector<16xf32>
    %57 = vector.multi_reduction <add>, %56, %cst_37 [1] : vector<16x128xf32> to vector<16xf32>
    %58 = vector.shape_cast %57 : vector<16xf32> to vector<16x1xf32>
    %cst_38 = arith.constant 1.280000e+02 : f32
    %59 = vector.broadcast %cst_38 : f32 to vector<16x1xf32>
    %60 = arith.divf %58, %59 : vector<16x1xf32>
    %61 = vector.broadcast %53 : vector<16x1xf32> to vector<16x128xf32>
    %62 = arith.subf %45, %61 : vector<16x128xf32>
    %cst_39 = arith.constant 9.99999974E-6 : f32
    %63 = vector.broadcast %cst_39 : f32 to vector<16x1xf32>
    %64 = arith.addf %60, %63 : vector<16x1xf32>
    %65 = math.rsqrt %64 : vector<16x1xf32>
    %66 = vector.broadcast %65 : vector<16x1xf32> to vector<16x128xf32>
    %67 = arith.mulf %62, %66 : vector<16x128xf32>
    %68 = vector.broadcast %47 : vector<1x128xf32> to vector<16x128xf32>
    %69 = arith.mulf %67, %68 : vector<16x128xf32>
    %70 = vector.broadcast %49 : vector<1x128xf32> to vector<16x128xf32>
    %71 = arith.addf %69, %70 : vector<16x128xf32>
    %72 = arith.truncf %71 : vector<16x128xf32> to vector<16x128xbf16>
    %c0_40 = arith.constant 0 : index
    %c0_41 = arith.constant 0 : index
    %c0_42 = arith.constant 0 : index
    %73 = vector.load %arg7[%c0_40, %c0_41, %c0_42] : memref<1x128x256xbf16, #tpu.memory_space<vmem>>, vector<1x128x256xbf16>
    %74 = vector.shape_cast %73 : vector<1x128x256xbf16> to vector<128x256xbf16>
    %cst_43 = arith.constant dense<0.000000e+00> : vector<16x256xf32>
    %75 = tpu.matmul %72, %74, %cst_43 {dimension_numbers = #tpu.dot_dimension_numbers<[1], [0], [0], [1], [0, 0, 1, 1], [], []>} : vector<16x128xbf16>, vector<128x256xbf16>, vector<16x256xf32> -> vector<16x256xf32>
    %c0_44 = arith.constant 0 : index
    %c0_45 = arith.constant 0 : index
    %c0_46 = arith.constant 0 : index
    %76 = vector.load %arg8[%c0_44, %c0_45, %c0_46] : memref<1x1x256xf32, #tpu.memory_space<vmem>>, vector<1x1x256xf32>
    %77 = vector.shape_cast %76 : vector<1x1x256xf32> to vector<1x256xf32>
    %78 = vector.broadcast %77 : vector<1x256xf32> to vector<16x256xf32>
    %79 = arith.addf %75, %78 : vector<16x256xf32>
    %cst_47 = arith.constant 0.000000e+00 : f32
    %80 = vector.broadcast %cst_47 : f32 to vector<16x256xf32>
    %81 = arith.maximumf %79, %80 : vector<16x256xf32>
    %82 = arith.truncf %81 : vector<16x256xf32> to vector<16x256xbf16>
    %c0_48 = arith.constant 0 : index
    %c0_49 = arith.constant 0 : index
    %c0_50 = arith.constant 0 : index
    %83 = vector.load %arg11[%c0_48, %c0_49, %c0_50] : memref<1x256x128xbf16, #tpu.memory_space<vmem>>, vector<1x256x128xbf16>
    %84 = vector.shape_cast %83 : vector<1x256x128xbf16> to vector<256x128xbf16>
    %cst_51 = arith.constant dense<0.000000e+00> : vector<16x128xf32>
    %85 = tpu.matmul %82, %84, %cst_51 {dimension_numbers = #tpu.dot_dimension_numbers<[1], [0], [0], [1], [0, 0, 1, 1], [], []>} : vector<16x256xbf16>, vector<256x128xbf16>, vector<16x128xf32> -> vector<16x128xf32>
    %c0_52 = arith.constant 0 : index
    %c0_53 = arith.constant 0 : index
    %c0_54 = arith.constant 0 : index
    %86 = vector.load %arg12[%c0_52, %c0_53, %c0_54] : memref<1x1x128xf32, #tpu.memory_space<vmem>>, vector<1x1x128xf32>
    %87 = vector.shape_cast %86 : vector<1x1x128xf32> to vector<1x128xf32>
    %88 = vector.broadcast %87 : vector<1x128xf32> to vector<16x128xf32>
    %89 = arith.addf %85, %88 : vector<16x128xf32>
    %90 = arith.addf %71, %89 : vector<16x128xf32>
    %91 = arith.addf %3, %90 : vector<16x128xf32>
    %c0_55 = arith.constant 0 : index
    %c0_56 = arith.constant 0 : index
    %92 = vector.load %arg20[%c0_55, %c0_56] : memref<16x128xf32, #tpu.memory_space<vmem>>, vector<16x128xf32>
    tpu.vector_store %arg20[%c0_55, %c0_56], %91 {strides = array<i32>} : memref<16x128xf32, #tpu.memory_space<vmem>>, vector<16x128xf32>,
    %c1_i32_57 = arith.constant 1 : i32
    %93 = arith.cmpi eq, %arg0, %c1_i32_57 : i32
    %94 = arith.extui %93 : i1 to i32
    %c0_i32_58 = arith.constant 0 : i32
    %95 = arith.cmpi ne, %94, %c0_i32_58 : i32
    scf.if %95 {
      %c0_59 = arith.constant 0 : index
      %c0_60 = arith.constant 0 : index
      %96 = vector.load %arg20[%c0_59, %c0_60] : memref<16x128xf32, #tpu.memory_space<vmem>>, vector<16x128xf32>
      %97 = vector.shape_cast %96 : vector<16x128xf32> to vector<2x8x128xf32>
      %c0_61 = arith.constant 0 : index
      %c0_62 = arith.constant 0 : index
      %98 = vector.load %arg13[%c0_61, %c0_62] : memref<1x128xf32, #tpu.memory_space<vmem>>, vector<1x128xf32>
      %c0_63 = arith.constant 0 : index
      %c0_64 = arith.constant 0 : index
      %99 = vector.load %arg14[%c0_63, %c0_64] : memref<1x128xf32, #tpu.memory_space<vmem>>, vector<1x128xf32>
      %cst_65 = arith.constant dense<0.000000e+00> : vector<2x8xf32>
      %100 = vector.multi_reduction <add>, %97, %cst_65 [2] : vector<2x8x128xf32> to vector<2x8xf32>
      %101 = vector.shape_cast %100 : vector<2x8xf32> to vector<2x8x1xf32>
      %cst_66 = arith.constant 1.280000e+02 : f32
      %102 = vector.broadcast %cst_66 : f32 to vector<2x8x1xf32>
      %103 = arith.divf %101, %102 : vector<2x8x1xf32>
      %104 = vector.broadcast %103 : vector<2x8x1xf32> to vector<2x8x128xf32>
      %105 = arith.subf %97, %104 : vector<2x8x128xf32>
      %106 = arith.mulf %105, %105 : vector<2x8x128xf32>
      %cst_67 = arith.constant dense<0.000000e+00> : vector<2x8xf32>
      %107 = vector.multi_reduction <add>, %106, %cst_67 [2] : vector<2x8x128xf32> to vector<2x8xf32>
      %108 = vector.shape_cast %107 : vector<2x8xf32> to vector<2x8x1xf32>
      %cst_68 = arith.constant 1.280000e+02 : f32
      %109 = vector.broadcast %cst_68 : f32 to vector<2x8x1xf32>
      %110 = arith.divf %108, %109 : vector<2x8x1xf32>
      %111 = vector.broadcast %103 : vector<2x8x1xf32> to vector<2x8x128xf32>
      %112 = arith.subf %97, %111 : vector<2x8x128xf32>
      %cst_69 = arith.constant 9.99999974E-6 : f32
      %113 = vector.broadcast %cst_69 : f32 to vector<2x8x1xf32>
      %114 = arith.addf %110, %113 : vector<2x8x1xf32>
      %115 = math.rsqrt %114 : vector<2x8x1xf32>
      %116 = vector.broadcast %115 : vector<2x8x1xf32> to vector<2x8x128xf32>
      %117 = arith.mulf %112, %116 : vector<2x8x128xf32>
      %118 = vector.shape_cast %98 : vector<1x128xf32> to vector<1x1x128xf32>
      %119 = vector.broadcast %118 : vector<1x1x128xf32> to vector<2x8x128xf32>
      %120 = arith.mulf %117, %119 : vector<2x8x128xf32>
      %121 = vector.shape_cast %99 : vector<1x128xf32> to vector<1x1x128xf32>
      %122 = vector.broadcast %121 : vector<1x1x128xf32> to vector<2x8x128xf32>
      %123 = arith.addf %120, %122 : vector<2x8x128xf32>
      %c0_70 = arith.constant 0 : index
      %c0_71 = arith.constant 0 : index
      %124 = vector.load %arg15[%c0_70, %c0_71] : memref<1x128xf32, #tpu.memory_space<vmem>>, vector<1x128xf32>
      %125 = vector.shape_cast %124 : vector<1x128xf32> to vector<1x1x128xf32>
      %126 = vector.broadcast %125 : vector<1x1x128xf32> to vector<2x8x128xf32>
      %127 = arith.mulf %123, %126 : vector<2x8x128xf32>
      %cst_72 = arith.constant dense<0.000000e+00> : vector<2x8xf32>
      %128 = vector.multi_reduction <add>, %127, %cst_72 [2] : vector<2x8x128xf32> to vector<2x8xf32>
      %129 = vector.shape_cast %128 : vector<2x8xf32> to vector<2x8x1xf32>
      %c0_73 = arith.constant 0 : index
      %c0_74 = arith.constant 0 : index
      %130 = vector.load %arg16[%c0_73, %c0_74] : memref<1x1xf32, #tpu.memory_space<vmem>>, vector<1x1xf32>
      %131 = vector.shape_cast %130 : vector<1x1xf32> to vector<1x1x1xf32>
      %132 = vector.broadcast %131 : vector<1x1x1xf32> to vector<2x8x1xf32>
      %133 = arith.addf %129, %132 : vector<2x8x1xf32>
      %cst_75 = arith.constant dense<0xFF800000> : vector<2x1xf32>
      %134 = vector.multi_reduction <maximumf>, %133, %cst_75 [1] : vector<2x8x1xf32> to vector<2x1xf32>
      %135 = vector.shape_cast %134 : vector<2x1xf32> to vector<2x1x1xf32>
      %136 = vector.broadcast %135 : vector<2x1x1xf32> to vector<2x8x1xf32>
      %137 = arith.subf %133, %136 : vector<2x8x1xf32>
      %138 = math.exp %137 : vector<2x8x1xf32>
      %cst_76 = arith.constant dense<0.000000e+00> : vector<2x1xf32>
      %139 = vector.multi_reduction <add>, %138, %cst_76 [1] : vector<2x8x1xf32> to vector<2x1xf32>
      %140 = vector.shape_cast %139 : vector<2x1xf32> to vector<2x1x1xf32>
      %141 = tpu.reciprocal %140 {approx = true} : vector<2x1x1xf32> -> vector<2x1x1xf32>
      %142 = vector.broadcast %141 : vector<2x1x1xf32> to vector<2x8x1xf32>
      %143 = arith.mulf %138, %142 : vector<2x8x1xf32>
      %144 = vector.broadcast %143 : vector<2x8x1xf32> to vector<2x8x128xf32>
      %145 = arith.mulf %144, %123 : vector<2x8x128xf32>
      %cst_77 = arith.constant dense<0.000000e+00> : vector<2x128xf32>
      %146 = vector.multi_reduction <add>, %145, %cst_77 [1] : vector<2x8x128xf32> to vector<2x128xf32>
      %147 = arith.truncf %146 : vector<2x128xf32> to vector<2x128xbf16>
      %c0_78 = arith.constant 0 : index
      %c0_79 = arith.constant 0 : index
      %148 = vector.load %arg17[%c0_78, %c0_79] : memref<128x128xbf16, #tpu.memory_space<vmem>>, vector<128x128xbf16>
      %cst_80 = arith.constant dense<0.000000e+00> : vector<2x128xf32>
      %149 = tpu.matmul %147, %148, %cst_80 {dimension_numbers = #tpu.dot_dimension_numbers<[1], [0], [0], [1], [0, 0, 1, 1], [], []>} : vector<2x128xbf16>, vector<128x128xbf16>, vector<2x128xf32> -> vector<2x128xf32>
      %c0_81 = arith.constant 0 : index
      %c0_82 = arith.constant 0 : index
      %150 = vector.load %arg18[%c0_81, %c0_82] : memref<1x128xf32, #tpu.memory_space<vmem>>, vector<1x128xf32>
      %151 = vector.broadcast %150 : vector<1x128xf32> to vector<2x128xf32>
      %152 = arith.addf %149, %151 : vector<2x128xf32>
      %c0_83 = arith.constant 0 : index
      %c0_84 = arith.constant 0 : index
      %153 = vector.load %arg19[%c0_83, %c0_84] : memref<2x128xf32, #tpu.memory_space<vmem>>, vector<2x128xf32>
      tpu.vector_store %arg19[%c0_83, %c0_84], %152 {strides = array<i32>} : memref<2x128xf32, #tpu.memory_space<vmem>>, vector<2x128xf32>,
    } else {
    }
    return
  }
  func.func @transform_1(%arg0: i32) -> (i32, i32, i32) {
    %c0_i32 = arith.constant 0 : i32
    %c0_i32_0 = arith.constant 0 : i32
    %c0_i32_1 = arith.constant 0 : i32
    return %arg0, %c0_i32, %c0_i32_0 : i32, i32, i32
  }
  func.func @transform_2(%arg0: i32) -> (i32, i32, i32) {
    %c0_i32 = arith.constant 0 : i32
    %c0_i32_0 = arith.constant 0 : i32
    %c0_i32_1 = arith.constant 0 : i32
    return %arg0, %c0_i32, %c0_i32_0 : i32, i32, i32
  }
  func.func @transform_3(%arg0: i32) -> (i32, i32, i32) {
    %c0_i32 = arith.constant 0 : i32
    %c0_i32_0 = arith.constant 0 : i32
    %c0_i32_1 = arith.constant 0 : i32
    return %arg0, %c0_i32, %c0_i32_0 : i32, i32, i32
  }
  func.func @transform_4(%arg0: i32) -> (i32, i32, i32) {
    %c0_i32 = arith.constant 0 : i32
    %c0_i32_0 = arith.constant 0 : i32
    %c0_i32_1 = arith.constant 0 : i32
    return %arg0, %c0_i32, %c0_i32_0 : i32, i32, i32
  }
  func.func @transform_5(%arg0: i32) -> (i32, i32, i32) {
    %c0_i32 = arith.constant 0 : i32
    %c0_i32_0 = arith.constant 0 : i32
    %c0_i32_1 = arith.constant 0 : i32
    return %arg0, %c0_i32, %c0_i32_0 : i32, i32, i32
  }
  func.func @transform_6(%arg0: i32) -> (i32, i32, i32) {
    %c0_i32 = arith.constant 0 : i32
    %c0_i32_0 = arith.constant 0 : i32
    %c0_i32_1 = arith.constant 0 : i32
    return %arg0, %c0_i32, %c0_i32_0 : i32, i32, i32
  }
  func.func @transform_7(%arg0: i32) -> (i32, i32, i32) {
    %c0_i32 = arith.constant 0 : i32
    %c0_i32_0 = arith.constant 0 : i32
    %c0_i32_1 = arith.constant 0 : i32
    return %arg0, %c0_i32, %c0_i32_0 : i32, i32, i32
  }
  func.func @transform_8(%arg0: i32) -> (i32, i32, i32) {
    %c0_i32 = arith.constant 0 : i32
    %c0_i32_0 = arith.constant 0 : i32
    %c0_i32_1 = arith.constant 0 : i32
    return %arg0, %c0_i32, %c0_i32_0 : i32, i32, i32
  }
  func.func @transform_9(%arg0: i32) -> (i32, i32, i32) {
    %c0_i32 = arith.constant 0 : i32
    %c0_i32_0 = arith.constant 0 : i32
    %c0_i32_1 = arith.constant 0 : i32
    return %arg0, %c0_i32, %c0_i32_0 : i32, i32, i32
  }
  func.func @transform_10(%arg0: i32) -> (i32, i32, i32) {
    %c0_i32 = arith.constant 0 : i32
    %c0_i32_0 = arith.constant 0 : i32
    %c0_i32_1 = arith.constant 0 : i32
    return %arg0, %c0_i32, %c0_i32_0 : i32, i32, i32
  }
  func.func @transform_11(%arg0: i32) -> (i32, i32, i32) {
    %c0_i32 = arith.constant 0 : i32
    %c0_i32_0 = arith.constant 0 : i32
    %c0_i32_1 = arith.constant 0 : i32
    return %arg0, %c0_i32, %c0_i32_0 : i32, i32, i32
  }
  func.func @transform_12(%arg0: i32) -> (i32, i32) {
    %c0_i32 = arith.constant 0 : i32
    %c0_i32_0 = arith.constant 0 : i32
    %c0_i32_1 = arith.constant 0 : i32
    return %c0_i32, %c0_i32_0 : i32, i32
  }
  func.func @transform_13(%arg0: i32) -> (i32, i32) {
    %c0_i32 = arith.constant 0 : i32
    %c0_i32_0 = arith.constant 0 : i32
    %c0_i32_1 = arith.constant 0 : i32
    return %c0_i32, %c0_i32_0 : i32, i32
  }
  func.func @transform_14(%arg0: i32) -> (i32, i32) {
    %c0_i32 = arith.constant 0 : i32
    %c0_i32_0 = arith.constant 0 : i32
    %c0_i32_1 = arith.constant 0 : i32
    return %c0_i32, %c0_i32_0 : i32, i32
  }
  func.func @transform_15(%arg0: i32) -> (i32, i32) {
    %c0_i32 = arith.constant 0 : i32
    %c0_i32_0 = arith.constant 0 : i32
    %c0_i32_1 = arith.constant 0 : i32
    return %c0_i32, %c0_i32_0 : i32, i32
  }
  func.func @transform_16(%arg0: i32) -> (i32, i32) {
    %c0_i32 = arith.constant 0 : i32
    %c0_i32_0 = arith.constant 0 : i32
    %c0_i32_1 = arith.constant 0 : i32
    return %c0_i32, %c0_i32_0 : i32, i32
  }
  func.func @transform_17(%arg0: i32) -> (i32, i32) {
    %c0_i32 = arith.constant 0 : i32
    %c0_i32_0 = arith.constant 0 : i32
    %c0_i32_1 = arith.constant 0 : i32
    return %c0_i32, %c0_i32_0 : i32, i32
  }
  func.func @transform_18(%arg0: i32) -> (i32, i32) {
    %c0_i32 = arith.constant 0 : i32
    %c0_i32_0 = arith.constant 0 : i32
    %c0_i32_1 = arith.constant 0 : i32
    return %c0_i32, %c0_i32_0 : i32, i32
  }
}

</mosaic_0001>

<llo_original>
// kernel: tpu_custom_call.1
$region0: #{tpu_custom_call.1}
  #allocation0 [shape = 'u32[]', space=smem, size = 0x4, offset = 0x4, fixed_abs, tag = 'smem constant byte address 0x4 - core index']
  #allocation1 [shape = 'u32[144,128]{1,0:T(1,128)}', space=vmem, size = 0x12000, scoped, tag = 'internal scratch']
  #allocation2 [shape = 'f32[16,128]{1,0:T(8,128)}', space=vmem, size = 0x2000, scoped, tag = 'scratch operand']
  #allocation3 [shape = 'f32[16,384]{1,0:T(8,128)}', space=vmem, size = 0x6000, scoped, tag = 'scratch operand']
  #allocation4 [shape = 'f32[16,128]{1,0:T(8,128)}', space=vmem, size = 0x2000, scoped, tag = 'scratch operand']
  #allocation5 [shape = 'f32[1,1]{1,0:T(1,128)S(1)}', space=vmem, size = 0x200, scoped, tag = 'scoped memory for tpu_custom_call.1']
  #allocation19 [shape = 's32[]', space=sflag, size = 0x4, offset = 0, fixed_abs, tag = 'sflag constant byte address 0x0 - dummy sync flag']
  #allocation20 [shape = 's32[]', space=sflag, size = 0x4, offset = 0, fixed_abs, tag = 'sflag constant byte address 0x0 - dummy sync flag']
  #allocation21 [shape = 'u32[]', space=smem, size = 0x4, offset = 0x44, fixed_abs, tag = 'smem constant byte address 0x44 - assertion arg 0']
  #allocation22 [shape = 'u32[]', space=smem, size = 0x4, offset = 0x48, fixed_abs, tag = 'smem constant byte address 0x48 - assertion arg 1']
  %s0 = inlined_call_operand.hbm [shape: f32[16,128], index: 0, kind: input, shape index: {}]
  %s1 = inlined_call_operand.vmem [shape: f32[2,1,128], index: 1, kind: input, shape index: {}]
  %s2 = inlined_call_operand.hbm [shape: f32[2,1,128], index: 2, kind: input, shape index: {}]
  %s3 = inlined_call_operand.hbm [shape: bf16[2,128,384], index: 3, kind: input, shape index: {}]
  %s4 = inlined_call_operand.hbm [shape: bf16[2,128,128], index: 4, kind: input, shape index: {}]
  %s5 = inlined_call_operand.vmem [shape: f32[2,1,128], index: 5, kind: input, shape index: {}]
  %s6 = inlined_call_operand.hbm [shape: bf16[2,128,256], index: 6, kind: input, shape index: {}]
  %s7 = inlined_call_operand.vmem [shape: f32[2,1,256], index: 7, kind: input, shape index: {}]
  %s8 = inlined_call_operand.vmem [shape: f32[2,1,128], index: 8, kind: input, shape index: {}]
  %s9 = inlined_call_operand.vmem [shape: f32[2,1,128], index: 9, kind: input, shape index: {}]
  %s10 = inlined_call_operand.hbm [shape: bf16[2,256,128], index: 10, kind: input, shape index: {}]
  %s11 = inlined_call_operand.vmem [shape: f32[2,1,128], index: 11, kind: input, shape index: {}]
  %s12 = inlined_call_operand.vmem [shape: f32[1,128], index: 12, kind: input, shape index: {}]
  %s13 = inlined_call_operand.vmem [shape: f32[1,128], index: 13, kind: input, shape index: {}]
  %s14 = inlined_call_operand.vmem [shape: f32[1,128], index: 14, kind: input, shape index: {}]
  %s15 = inlined_call_operand.<no memory space> [shape: f32[1,1], index: 15, kind: input, shape index: {}]
  %s16 = inlined_call_operand.hbm [shape: bf16[128,128], index: 16, kind: input, shape index: {}]
  %s17 = inlined_call_operand.vmem [shape: f32[1,128], index: 17, kind: input, shape index: {}]
  %s18 = inlined_call_operand.hbm [shape: f32[2,128], index: 18, kind: output, shape index: {}]
  %s19 = sld [smem:[#allocation0]]
  $region145: #{tpu_custom_call.1} parent=0
    _
  %s21 = ssub.s32 1, %s19
  %s22 = scalar_select 0, %s21, %s19
  %v23 = vstv %s15
  %24 = vst [vmem:[#allocation5] sm:$0x1] %v23
  $region1: #{tpu_custom_call.1} parent=0
    #allocation6 [shape = 'u8[1024]{0}', space=vmem, size = 0x400, scoped, tag = 'input window, operand 2']
    #allocation7 [shape = 's32[2]{0}', space=sflag, size = 0x8, scoped, tag = 'scoped memory for tpu_custom_call.1']
    #allocation8 [shape = 's32[2]{0}', space=sflag, size = 0x8, scoped, tag = 'scoped memory for tpu_custom_call.1']
    #allocation9 [shape = 'u8[196608]{0}', space=vmem, size = 0x30000, scoped, tag = 'input window, operand 3']
    #allocation10 [shape = 's32[2]{0}', space=sflag, size = 0x8, scoped, tag = 'scoped memory for tpu_custom_call.1']
    #allocation11 [shape = 'u8[65536]{0}', space=vmem, size = 0x10000, scoped, tag = 'input window, operand 4']
    #allocation12 [shape = 'u8[131072]{0}', space=vmem, size = 0x20000, scoped, tag = 'input window, operand 6']
    #allocation13 [shape = 's32[2]{0}', space=sflag, size = 0x8, scoped, tag = 'scoped memory for tpu_custom_call.1']
    #allocation14 [shape = 'u8[131072]{0}', space=vmem, size = 0x20000, scoped, tag = 'input window, operand 10']
    #allocation15 [shape = 'u8[32768]{0}', space=vmem, size = 0x8000, scoped, tag = 'input window, operand 16, single buffered']
    #allocation16 [shape = 's32[1]{0}', space=sflag, size = 0x4, scoped, tag = 'scoped memory for tpu_custom_call.1']
    #allocation17 [shape = 'u8[1024]{0}', space=vmem, size = 0x400, scoped, tag = 'output window, operand 0, single buffered']
    %25 = vsyncpa [#allocation7], 0
    %s26 = scalar_lea.sflag [#allocation7], 1
    %27 = vsyncpa %s26, 0
    %28 = vsyncpa [#allocation10], 0
    %s29 = scalar_lea.sflag [#allocation10], 1
    %30 = vsyncpa %s29, 0
    %31 = vsyncpa [#allocation13], 0
    %s32 = scalar_lea.sflag [#allocation13], 1
    %33 = vsyncpa %s32, 0
    %34 = vsyncpa [#allocation16], 0
    %35 = vsyncpa [#allocation8], 0
    loop: start=0, step=1, limit=4
    $region2: #{tpu_custom_call.1} parent=1 // loop_pre_header
      _
    $region3: #{tpu_custom_call.1} parent=1 // loop_header
      %s37 = sphi 0, %s41
      %p38 = scmp.ge.s32.totalorder %s37, 4
      %s47 = sphi 0, %s49
      %s50 = sphi 0, %s47
      %s51 = sphi 0, %s50
      %s67 = sphi 0, %s51
      %s73 = sphi 0, %s75
      %s76 = sphi 0, %s73
      %s77 = sphi 0, %s76
      %s93 = sphi 0, %s77
      %s99 = sphi 0, %s101
      %s102 = sphi 0, %s99
      %s103 = sphi 0, %s102
      %s119 = sphi 0, %s103
      %s125 = sphi 0, %s127
      %s128 = sphi 0, %s125
      %s129 = sphi 0, %s128
      %s145 = sphi 0, %s129
      %s151 = sphi 0, %s153
      %s154 = sphi 0, %s151
      %s155 = sphi 0, %s154
      %s171 = sphi 0, %s155
      %s177 = sphi 0, %s179
      %s180 = sphi 0, %s177
      %s181 = sphi 0, %s180
      %s197 = sphi 0, %s181
      %s203 = sphi 0, %s205
      %s206 = sphi 0, %s203
      %s207 = sphi 0, %s206
      %s223 = sphi 0, %s207
      %s229 = sphi 0, %s231
      %s232 = sphi 0, %s229
      %s233 = sphi 0, %s232
      %s249 = sphi 0, %s233
      %s255 = sphi 0, %s257
      %s258 = sphi 0, %s255
      %s259 = sphi 0, %s258
      %s275 = sphi 0, %s259
      %s281 = sphi 0, %s283
      %s284 = sphi 0, %s281
      %s285 = sphi 0, %s284
      %s301 = sphi 0, %s285
      %s307 = sphi 0, %s309
      %s310 = sphi 0, %s307
      %s311 = sphi 0, %s310
      %s327 = sphi 0, %s311
      %s331 = sphi 0, %s331
      %s333 = sphi 0, %s331
      %s334 = sphi 0, %s333
      %s348 = sphi 0, %s334
      %s352 = sphi 0, %s352
      %s354 = sphi 0, %s352
      %s355 = sphi 0, %s354
      %s369 = sphi 0, %s355
      %s373 = sphi 0, %s373
      %s375 = sphi 0, %s373
      %s376 = sphi 0, %s375
      %s390 = sphi 0, %s376
      %s394 = sphi 0, %s394
      %s396 = sphi 0, %s394
      %s397 = sphi 0, %s396
      %s411 = sphi 0, %s397
      %s415 = sphi 0, %s415
      %s417 = sphi 0, %s415
      %s418 = sphi 0, %s417
      %s432 = sphi 0, %s418
      %s436 = sphi 0, %s436
      %s438 = sphi 0, %s436
      %s439 = sphi 0, %s438
      %s453 = sphi 0, %s439
      %s457 = sphi 0, %s457
      %s459 = sphi 0, %s457
      %s460 = sphi 0, %s459
      %s474 = sphi 0, %s460
    $region4: #{tpu_custom_call.1} parent=1 // loop_header_branch
      %40 = sbr.rel (%p38) target = $region8
    $region5: #{tpu_custom_call.1} parent=1 // loop_body
      %s42 = ssub.s32 %s37, 1
      %s43 = ssub.s32 %s37, 2
      %s44 = sadd.s32 %s37, 1
      %s45 = ssub.s32 %s37, %s44
      %p46 = scmp.eq.s32.totalorder %s45, 0
      %s48 = sadd.s32 %s47, 1
      %s49 = scalar_select %p46, %s47, %s48
      %p52 = pneg %p46
      %p53 = scmp.eq.s32.totalorder %s37, 1
      %p54 = por %p52, %p53
      %p55 = scmp.ne.s32.totalorder %s47, %s50
      %p56 = scmp.eq.s32.totalorder %s37, 0
      %p57 = por %p55, %p56
      %p58 = scmp.ne.s32.totalorder %s47, %s50
      %p59 = scmp.eq.s32.totalorder %s42, 1
      %p60 = por %p58, %p59
      %p61 = scmp.ne.s32.totalorder %s50, %s51
      %p62 = scmp.eq.s32.totalorder %s42, 0
      %p63 = por %p61, %p62
      %p64 = scmp.ne.s32.totalorder %s50, %s51
      %p65 = scmp.eq.s32.totalorder %s43, 1
      %p66 = por %p64, %p65
      %p68 = scmp.ne.s32.totalorder %s51, %s67
      %p69 = scmp.eq.s32.totalorder %s43, 0
      %p70 = por %p68, %p69
      %s71 = ssub.s32 %s37, %s44
      %p72 = scmp.eq.s32.totalorder %s71, 0
      %s74 = sadd.s32 %s73, 1
      %s75 = scalar_select %p72, %s73, %s74
      %p78 = pneg %p72
      %p79 = scmp.eq.s32.totalorder %s37, 1
      %p80 = por %p78, %p79
      %p81 = scmp.ne.s32.totalorder %s73, %s76
      %p82 = scmp.eq.s32.totalorder %s37, 0
      %p83 = por %p81, %p82
      %p84 = scmp.ne.s32.totalorder %s73, %s76
      %p85 = scmp.eq.s32.totalorder %s42, 1
      %p86 = por %p84, %p85
      %p87 = scmp.ne.s32.totalorder %s76, %s77
      %p88 = scmp.eq.s32.totalorder %s42, 0
      %p89 = por %p87, %p88
      %p90 = scmp.ne.s32.totalorder %s76, %s77
      %p91 = scmp.eq.s32.totalorder %s43, 1
      %p92 = por %p90, %p91
      %p94 = scmp.ne.s32.totalorder %s77, %s93
      %p95 = scmp.eq.s32.totalorder %s43, 0
      %p96 = por %p94, %p95
      %s97 = ssub.s32 %s37, %s44
      %p98 = scmp.eq.s32.totalorder %s97, 0
      %s100 = sadd.s32 %s99, 1
      %s101 = scalar_select %p98, %s99, %s100
      %p104 = pneg %p98
      %p105 = scmp.eq.s32.totalorder %s37, 1
      %p106 = por %p104, %p105
      %p107 = scmp.ne.s32.totalorder %s99, %s102
      %p108 = scmp.eq.s32.totalorder %s37, 0
      %p109 = por %p107, %p108
      %p110 = scmp.ne.s32.totalorder %s99, %s102
      %p111 = scmp.eq.s32.totalorder %s42, 1
      %p112 = por %p110, %p111
      %p113 = scmp.ne.s32.totalorder %s102, %s103
      %p114 = scmp.eq.s32.totalorder %s42, 0
      %p115 = por %p113, %p114
      %p116 = scmp.ne.s32.totalorder %s102, %s103
      %p117 = scmp.eq.s32.totalorder %s43, 1
      %p118 = por %p116, %p117
      %p120 = scmp.ne.s32.totalorder %s103, %s119
      %p121 = scmp.eq.s32.totalorder %s43, 0
      %p122 = por %p120, %p121
      %s123 = ssub.s32 %s37, %s44
      %p124 = scmp.eq.s32.totalorder %s123, 0
      %s126 = sadd.s32 %s125, 1
      %s127 = scalar_select %p124, %s125, %s126
      %p130 = pneg %p124
      %p131 = scmp.eq.s32.totalorder %s37, 1
      %p132 = por %p130, %p131
      %p133 = scmp.ne.s32.totalorder %s125, %s128
      %p134 = scmp.eq.s32.totalorder %s37, 0
      %p135 = por %p133, %p134
      %p136 = scmp.ne.s32.totalorder %s125, %s128
      %p137 = scmp.eq.s32.totalorder %s42, 1
      %p138 = por %p136, %p137
      %p139 = scmp.ne.s32.totalorder %s128, %s129
      %p140 = scmp.eq.s32.totalorder %s42, 0
      %p141 = por %p139, %p140
      %p142 = scmp.ne.s32.totalorder %s128, %s129
      %p143 = scmp.eq.s32.totalorder %s43, 1
      %p144 = por %p142, %p143
      %p146 = scmp.ne.s32.totalorder %s129, %s145
      %p147 = scmp.eq.s32.totalorder %s43, 0
      %p148 = por %p146, %p147
      %s149 = ssub.s32 %s37, %s44
      %p150 = scmp.eq.s32.totalorder %s149, 0
      %s152 = sadd.s32 %s151, 1
      %s153 = scalar_select %p150, %s151, %s152
      %p156 = pneg %p150
      %p157 = scmp.eq.s32.totalorder %s37, 1
      %p158 = por %p156, %p157
      %p159 = scmp.ne.s32.totalorder %s151, %s154
      %p160 = scmp.eq.s32.totalorder %s37, 0
      %p161 = por %p159, %p160
      %p162 = scmp.ne.s32.totalorder %s151, %s154
      %p163 = scmp.eq.s32.totalorder %s42, 1
      %p164 = por %p162, %p163
      %p165 = scmp.ne.s32.totalorder %s154, %s155
      %p166 = scmp.eq.s32.totalorder %s42, 0
      %p167 = por %p165, %p166
      %p168 = scmp.ne.s32.totalorder %s154, %s155
      %p169 = scmp.eq.s32.totalorder %s43, 1
      %p170 = por %p168, %p169
      %p172 = scmp.ne.s32.totalorder %s155, %s171
      %p173 = scmp.eq.s32.totalorder %s43, 0
      %p174 = por %p172, %p173
      %s175 = ssub.s32 %s37, %s44
      %p176 = scmp.eq.s32.totalorder %s175, 0
      %s178 = sadd.s32 %s177, 1
      %s179 = scalar_select %p176, %s177, %s178
      %p182 = pneg %p176
      %p183 = scmp.eq.s32.totalorder %s37, 1
      %p184 = por %p182, %p183
      %p185 = scmp.ne.s32.totalorder %s177, %s180
      %p186 = scmp.eq.s32.totalorder %s37, 0
      %p187 = por %p185, %p186
      %p188 = scmp.ne.s32.totalorder %s177, %s180
      %p189 = scmp.eq.s32.totalorder %s42, 1
      %p190 = por %p188, %p189
      %p191 = scmp.ne.s32.totalorder %s180, %s181
      %p192 = scmp.eq.s32.totalorder %s42, 0
      %p193 = por %p191, %p192
      %p194 = scmp.ne.s32.totalorder %s180, %s181
      %p195 = scmp.eq.s32.totalorder %s43, 1
      %p196 = por %p194, %p195
      %p198 = scmp.ne.s32.totalorder %s181, %s197
      %p199 = scmp.eq.s32.totalorder %s43, 0
      %p200 = por %p198, %p199
      %s201 = ssub.s32 %s37, %s44
      %p202 = scmp.eq.s32.totalorder %s201, 0
      %s204 = sadd.s32 %s203, 1
      %s205 = scalar_select %p202, %s203, %s204
      %p208 = pneg %p202
      %p209 = scmp.eq.s32.totalorder %s37, 1
      %p210 = por %p208, %p209
      %p211 = scmp.ne.s32.totalorder %s203, %s206
      %p212 = scmp.eq.s32.totalorder %s37, 0
      %p213 = por %p211, %p212
      %p214 = scmp.ne.s32.totalorder %s203, %s206
      %p215 = scmp.eq.s32.totalorder %s42, 1
      %p216 = por %p214, %p215
      %p217 = scmp.ne.s32.totalorder %s206, %s207
      %p218 = scmp.eq.s32.totalorder %s42, 0
      %p219 = por %p217, %p218
      %p220 = scmp.ne.s32.totalorder %s206, %s207
      %p221 = scmp.eq.s32.totalorder %s43, 1
      %p222 = por %p220, %p221
      %p224 = scmp.ne.s32.totalorder %s207, %s223
      %p225 = scmp.eq.s32.totalorder %s43, 0
      %p226 = por %p224, %p225
      %s227 = ssub.s32 %s37, %s44
      %p228 = scmp.eq.s32.totalorder %s227, 0
      %s230 = sadd.s32 %s229, 1
      %s231 = scalar_select %p228, %s229, %s230
      %p234 = pneg %p228
      %p235 = scmp.eq.s32.totalorder %s37, 1
      %p236 = por %p234, %p235
      %p237 = scmp.ne.s32.totalorder %s229, %s232
      %p238 = scmp.eq.s32.totalorder %s37, 0
      %p239 = por %p237, %p238
      %p240 = scmp.ne.s32.totalorder %s229, %s232
      %p241 = scmp.eq.s32.totalorder %s42, 1
      %p242 = por %p240, %p241
      %p243 = scmp.ne.s32.totalorder %s232, %s233
      %p244 = scmp.eq.s32.totalorder %s42, 0
      %p245 = por %p243, %p244
      %p246 = scmp.ne.s32.totalorder %s232, %s233
      %p247 = scmp.eq.s32.totalorder %s43, 1
      %p248 = por %p246, %p247
      %p250 = scmp.ne.s32.totalorder %s233, %s249
      %p251 = scmp.eq.s32.totalorder %s43, 0
      %p252 = por %p250, %p251
      %s253 = ssub.s32 %s37, %s44
      %p254 = scmp.eq.s32.totalorder %s253, 0
      %s256 = sadd.s32 %s255, 1
      %s257 = scalar_select %p254, %s255, %s256
      %p260 = pneg %p254
      %p261 = scmp.eq.s32.totalorder %s37, 1
      %p262 = por %p260, %p261
      %p263 = scmp.ne.s32.totalorder %s255, %s258
      %p264 = scmp.eq.s32.totalorder %s37, 0
      %p265 = por %p263, %p264
      %p266 = scmp.ne.s32.totalorder %s255, %s258
      %p267 = scmp.eq.s32.totalorder %s42, 1
      %p268 = por %p266, %p267
      %p269 = scmp.ne.s32.totalorder %s258, %s259
      %p270 = scmp.eq.s32.totalorder %s42, 0
      %p271 = por %p269, %p270
      %p272 = scmp.ne.s32.totalorder %s258, %s259
      %p273 = scmp.eq.s32.totalorder %s43, 1
      %p274 = por %p272, %p273
      %p276 = scmp.ne.s32.totalorder %s259, %s275
      %p277 = scmp.eq.s32.totalorder %s43, 0
      %p278 = por %p276, %p277
      %s279 = ssub.s32 %s37, %s44
      %p280 = scmp.eq.s32.totalorder %s279, 0
      %s282 = sadd.s32 %s281, 1
      %s283 = scalar_select %p280, %s281, %s282
      %p286 = pneg %p280
      %p287 = scmp.eq.s32.totalorder %s37, 1
      %p288 = por %p286, %p287
      %p289 = scmp.ne.s32.totalorder %s281, %s284
      %p290 = scmp.eq.s32.totalorder %s37, 0
      %p291 = por %p289, %p290
      %p292 = scmp.ne.s32.totalorder %s281, %s284
      %p293 = scmp.eq.s32.totalorder %s42, 1
      %p294 = por %p292, %p293
      %p295 = scmp.ne.s32.totalorder %s284, %s285
      %p296 = scmp.eq.s32.totalorder %s42, 0
      %p297 = por %p295, %p296
      %p298 = scmp.ne.s32.totalorder %s284, %s285
      %p299 = scmp.eq.s32.totalorder %s43, 1
      %p300 = por %p298, %p299
      %p302 = scmp.ne.s32.totalorder %s285, %s301
      %p303 = scmp.eq.s32.totalorder %s43, 0
      %p304 = por %p302, %p303
      %s305 = ssub.s32 %s37, %s44
      %p306 = scmp.eq.s32.totalorder %s305, 0
      %s308 = sadd.s32 %s307, 1
      %s309 = scalar_select %p306, %s307, %s308
      %p312 = pneg %p306
      %p313 = scmp.eq.s32.totalorder %s37, 1
      %p314 = por %p312, %p313
      %p315 = scmp.ne.s32.totalorder %s307, %s310
      %p316 = scmp.eq.s32.totalorder %s37, 0
      %p317 = por %p315, %p316
      %p318 = scmp.ne.s32.totalorder %s307, %s310
      %p319 = scmp.eq.s32.totalorder %s42, 1
      %p320 = por %p318, %p319
      %p321 = scmp.ne.s32.totalorder %s310, %s311
      %p322 = scmp.eq.s32.totalorder %s42, 0
      %p323 = por %p321, %p322
      %p324 = scmp.ne.s32.totalorder %s310, %s311
      %p325 = scmp.eq.s32.totalorder %s43, 1
      %p326 = por %p324, %p325
      %p328 = scmp.ne.s32.totalorder %s311, %s327
      %p329 = scmp.eq.s32.totalorder %s43, 0
      %p330 = por %p328, %p329
      %s332 = sadd.s32 %s331, 1
      %p335 = scmp.eq.s32.totalorder %s37, 1
      %p336 = scmp.ne.s32.totalorder %s331, %s333
      %p337 = scmp.eq.s32.totalorder %s37, 0
      %p338 = por %p336, %p337
      %p339 = scmp.ne.s32.totalorder %s331, %s333
      %p340 = scmp.eq.s32.totalorder %s42, 1
      %p341 = por %p339, %p340
      %p342 = scmp.ne.s32.totalorder %s333, %s334
      %p343 = scmp.eq.s32.totalorder %s42, 0
      %p344 = por %p342, %p343
      %p345 = scmp.ne.s32.totalorder %s333, %s334
      %p346 = scmp.eq.s32.totalorder %s43, 1
      %p347 = por %p345, %p346
      %p349 = scmp.ne.s32.totalorder %s334, %s348
      %p350 = scmp.eq.s32.totalorder %s43, 0
      %p351 = por %p349, %p350
      %s353 = sadd.s32 %s352, 1
      %p356 = scmp.eq.s32.totalorder %s37, 1
      %p357 = scmp.ne.s32.totalorder %s352, %s354
      %p358 = scmp.eq.s32.totalorder %s37, 0
      %p359 = por %p357, %p358
      %p360 = scmp.ne.s32.totalorder %s352, %s354
      %p361 = scmp.eq.s32.totalorder %s42, 1
      %p362 = por %p360, %p361
      %p363 = scmp.ne.s32.totalorder %s354, %s355
      %p364 = scmp.eq.s32.totalorder %s42, 0
      %p365 = por %p363, %p364
      %p366 = scmp.ne.s32.totalorder %s354, %s355
      %p367 = scmp.eq.s32.totalorder %s43, 1
      %p368 = por %p366, %p367
      %p370 = scmp.ne.s32.totalorder %s355, %s369
      %p371 = scmp.eq.s32.totalorder %s43, 0
      %p372 = por %p370, %p371
      %s374 = sadd.s32 %s373, 1
      %p377 = scmp.eq.s32.totalorder %s37, 1
      %p378 = scmp.ne.s32.totalorder %s373, %s375
      %p379 = scmp.eq.s32.totalorder %s37, 0
      %p380 = por %p378, %p379
      %p381 = scmp.ne.s32.totalorder %s373, %s375
      %p382 = scmp.eq.s32.totalorder %s42, 1
      %p383 = por %p381, %p382
      %p384 = scmp.ne.s32.totalorder %s375, %s376
      %p385 = scmp.eq.s32.totalorder %s42, 0
      %p386 = por %p384, %p385
      %p387 = scmp.ne.s32.totalorder %s375, %s376
      %p388 = scmp.eq.s32.totalorder %s43, 1
      %p389 = por %p387, %p388
      %p391 = scmp.ne.s32.totalorder %s376, %s390
      %p392 = scmp.eq.s32.totalorder %s43, 0
      %p393 = por %p391, %p392
      %s395 = sadd.s32 %s394, 1
      %p398 = scmp.eq.s32.totalorder %s37, 1
      %p399 = scmp.ne.s32.totalorder %s394, %s396
      %p400 = scmp.eq.s32.totalorder %s37, 0
      %p401 = por %p399, %p400
      %p402 = scmp.ne.s32.totalorder %s394, %s396
      %p403 = scmp.eq.s32.totalorder %s42, 1
      %p404 = por %p402, %p403
      %p405 = scmp.ne.s32.totalorder %s396, %s397
      %p406 = scmp.eq.s32.totalorder %s42, 0
      %p407 = por %p405, %p406
      %p408 = scmp.ne.s32.totalorder %s396, %s397
      %p409 = scmp.eq.s32.totalorder %s43, 1
      %p410 = por %p408, %p409
      %p412 = scmp.ne.s32.totalorder %s397, %s411
      %p413 = scmp.eq.s32.totalorder %s43, 0
      %p414 = por %p412, %p413
      %s416 = sadd.s32 %s415, 1
      %p419 = scmp.eq.s32.totalorder %s37, 1
      %p420 = scmp.ne.s32.totalorder %s415, %s417
      %p421 = scmp.eq.s32.totalorder %s37, 0
      %p422 = por %p420, %p421
      %p423 = scmp.ne.s32.totalorder %s415, %s417
      %p424 = scmp.eq.s32.totalorder %s42, 1
      %p425 = por %p423, %p424
      %p426 = scmp.ne.s32.totalorder %s417, %s418
      %p427 = scmp.eq.s32.totalorder %s42, 0
      %p428 = por %p426, %p427
      %p429 = scmp.ne.s32.totalorder %s417, %s418
      %p430 = scmp.eq.s32.totalorder %s43, 1
      %p431 = por %p429, %p430
      %p433 = scmp.ne.s32.totalorder %s418, %s432
      %p434 = scmp.eq.s32.totalorder %s43, 0
      %p435 = por %p433, %p434
      %s437 = sadd.s32 %s436, 1
      %p440 = scmp.eq.s32.totalorder %s37, 1
      %p441 = scmp.ne.s32.totalorder %s436, %s438
      %p442 = scmp.eq.s32.totalorder %s37, 0
      %p443 = por %p441, %p442
      %p444 = scmp.ne.s32.totalorder %s436, %s438
      %p445 = scmp.eq.s32.totalorder %s42, 1
      %p446 = por %p444, %p445
      %p447 = scmp.ne.s32.totalorder %s438, %s439
      %p448 = scmp.eq.s32.totalorder %s42, 0
      %p449 = por %p447, %p448
      %p450 = scmp.ne.s32.totalorder %s438, %s439
      %p451 = scmp.eq.s32.totalorder %s43, 1
      %p452 = por %p450, %p451
      %p454 = scmp.ne.s32.totalorder %s439, %s453
      %p455 = scmp.eq.s32.totalorder %s43, 0
      %p456 = por %p454, %p455
      %s458 = sadd.s32 %s457, 1
      %p461 = scmp.eq.s32.totalorder %s37, 1
      %p462 = scmp.ne.s32.totalorder %s457, %s459
      %p463 = scmp.eq.s32.totalorder %s37, 0
      %p464 = por %p462, %p463
      %p465 = scmp.ne.s32.totalorder %s457, %s459
      %p466 = scmp.eq.s32.totalorder %s42, 1
      %p467 = por %p465, %p466
      %p468 = scmp.ne.s32.totalorder %s459, %s460
      %p469 = scmp.eq.s32.totalorder %s42, 0
      %p470 = por %p468, %p469
      %p471 = scmp.ne.s32.totalorder %s459, %s460
      %p472 = scmp.eq.s32.totalorder %s43, 1
      %p473 = por %p471, %p472
      %p475 = scmp.ne.s32.totalorder %s460, %s474
      %p476 = scmp.eq.s32.totalorder %s43, 0
      %p477 = por %p475, %p476
      %p478 = scmp.le.s32.totalorder 1, %s37
      %p479 = scmp.lt.s32.totalorder %s37, 3
      %p480 = pnand %p478, %p479
      %p481 = pneg %p480
      // Predicated region
      $region9: #{tpu_custom_call.1} parent=5 // pred_check
        _
      $region10: #{tpu_custom_call.1} parent=5 // pred_check_branch
        %483 = sbr.rel (%p480) target = $region12
      $region11: #{tpu_custom_call.1} parent=5 // pred_region
        %s484 = ssub.s32 %s37, 1
        // Predicated region
        $region13: #{tpu_custom_call.1} parent=11 // pred_check
          %p485 = pneg %p344
        $region14: #{tpu_custom_call.1} parent=11 // pred_check_branch
          %487 = sbr.rel (%p485) target = $region16
        $region15: #{tpu_custom_call.1} parent=11 // pred_region
          _
        $region16: #{tpu_custom_call.1} parent=11 // pred_fallthru
          _
        // Predicated region
        $region17: #{tpu_custom_call.1} parent=11 // pred_check
          %p488 = pneg %p365
        $region18: #{tpu_custom_call.1} parent=11 // pred_check_branch
          %490 = sbr.rel (%p488) target = $region20
        $region19: #{tpu_custom_call.1} parent=11 // pred_region
          _
        $region20: #{tpu_custom_call.1} parent=11 // pred_fallthru
          _
        // Predicated region
        $region21: #{tpu_custom_call.1} parent=11 // pred_check
          %p491 = pneg %p386
        $region22: #{tpu_custom_call.1} parent=11 // pred_check_branch
          %493 = sbr.rel (%p491) target = $region24
        $region23: #{tpu_custom_call.1} parent=11 // pred_region
          _
        $region24: #{tpu_custom_call.1} parent=11 // pred_fallthru
          _
        // Predicated region
        $region25: #{tpu_custom_call.1} parent=11 // pred_check
          %p494 = pneg %p407
        $region26: #{tpu_custom_call.1} parent=11 // pred_check_branch
          %496 = sbr.rel (%p494) target = $region28
        $region27: #{tpu_custom_call.1} parent=11 // pred_region
          _
        $region28: #{tpu_custom_call.1} parent=11 // pred_fallthru
          _
        // Predicated region
        $region29: #{tpu_custom_call.1} parent=11 // pred_check
          %p497 = pneg %p428
        $region30: #{tpu_custom_call.1} parent=11 // pred_check_branch
          %499 = sbr.rel (%p497) target = $region32
        $region31: #{tpu_custom_call.1} parent=11 // pred_region
          %s501 = ssub.s32 1024, 1024
          %502 = vsyncadd [#allocation16], %s501
          %s503 = sshll.u32 [#allocation15], 4
          %s504 = int_to_ptr.vmem [resolvable:$true] %s503
          %509 = dma.hbm_to_vmem [thread:$0]  %s16, 1024, %s504, [#allocation16], 64, 64, 4
        $region32: #{tpu_custom_call.1} parent=11 // pred_fallthru
          _
        // Predicated region
        $region33: #{tpu_custom_call.1} parent=11 // pred_check
          %p510 = pneg %p449
        $region34: #{tpu_custom_call.1} parent=11 // pred_check_branch
          %512 = sbr.rel (%p510) target = $region36
        $region35: #{tpu_custom_call.1} parent=11 // pred_region
          _
        $region36: #{tpu_custom_call.1} parent=11 // pred_fallthru
          _
      $region12: #{tpu_custom_call.1} parent=5 // pred_fallthru
        _
      %p513 = scmp.lt.s32.totalorder %s37, 2
      // Predicated region
      $region37: #{tpu_custom_call.1} parent=5 // pred_check
        %p514 = pneg %p513
      $region38: #{tpu_custom_call.1} parent=5 // pred_check_branch
        %516 = sbr.rel (%p514) target = $region40
      $region39: #{tpu_custom_call.1} parent=5 // pred_region
        // Predicated region
        $region41: #{tpu_custom_call.1} parent=39 // pred_check
          %p517 = pneg %p57
        $region42: #{tpu_custom_call.1} parent=39 // pred_check_branch
          %519 = sbr.rel (%p517) target = $region44
        $region43: #{tpu_custom_call.1} parent=39 // pred_region
          %p520 = scmp.lt.s32.totalorder %s37, 1
          %s521 = scalar_select %p520, %s37, 1
          %s522 = scalar_lea.vmem %s1, %s521
        $region44: #{tpu_custom_call.1} parent=39 // pred_fallthru
          _
        // Predicated region
        $region45: #{tpu_custom_call.1} parent=39 // pred_check
          %p523 = pneg %p83
        $region46: #{tpu_custom_call.1} parent=39 // pred_check_branch
          %525 = sbr.rel (%p523) target = $region48
        $region47: #{tpu_custom_call.1} parent=39 // pred_region
          %s526 = sand.u32 %s73, 1
          %s527 = scalar_lea.sflag [#allocation7], %s526
          %s528 = sand.u32 %s73, 1
          %s529 = scalar_lea.vmem [#allocation6], %s528
          %s531 = ssub.s32 16, 16
          %532 = vsyncadd %s527, %s531
          %s533 = smul.addr %s37, 16
          %s534 = scalar_lea.hbm %s2, %s533
          %s536 = sshll.u32 %s529, 4
          %s537 = int_to_ptr.vmem [resolvable:$true] %s536
          %539 = dma.hbm_to_vmem [thread:$0]  %s534, 16, %s537, %s527
        $region48: #{tpu_custom_call.1} parent=39 // pred_fallthru
          _
        // Predicated region
        $region49: #{tpu_custom_call.1} parent=39 // pred_check
          %p540 = pneg %p109
        $region50: #{tpu_custom_call.1} parent=39 // pred_check_branch
          %542 = sbr.rel (%p540) target = $region52
        $region51: #{tpu_custom_call.1} parent=39 // pred_region
          %s543 = sand.u32 %s37, 1
          %s544 = scalar_lea.sflag [#allocation10], %s543
          %s545 = sand.u32 %s99, 1
          %s546 = smul.addr %s545, 192
          %s547 = scalar_lea.vmem [#allocation9], %s546
          %s549 = ssub.s32 3072, 3072
          %550 = vsyncadd %s544, %s549
          %s551 = smul.addr %s37, 48
          %s552 = smul.addr %s551, 64
          %s553 = scalar_lea.hbm %s3, %s552
          %s554 = sshll.u32 %s547, 4
          %s555 = int_to_ptr.vmem [resolvable:$true] %s554
          %560 = dma.hbm_to_vmem [thread:$0]  %s553, 3072, %s555, %s544, 192, 192, 12
        $region52: #{tpu_custom_call.1} parent=39 // pred_fallthru
          _
        // Predicated region
        $region53: #{tpu_custom_call.1} parent=39 // pred_check
          %p561 = pneg %p135
        $region54: #{tpu_custom_call.1} parent=39 // pred_check_branch
          %563 = sbr.rel (%p561) target = $region56
        $region55: #{tpu_custom_call.1} parent=39 // pred_region
          %s564 = sand.u32 %s37, 1
          %s565 = scalar_lea.sflag [#allocation10], %s564
          %s566 = sand.u32 %s125, 1
          %s567 = smul.addr %s566, 64
          %s568 = scalar_lea.vmem [#allocation11], %s567
          %s570 = ssub.s32 1024, 1024
          %571 = vsyncadd %s565, %s570
          %s572 = smul.addr %s37, 16
          %s573 = smul.addr %s572, 64
          %s574 = scalar_lea.hbm %s4, %s573
          %s575 = sshll.u32 %s568, 4
          %s576 = int_to_ptr.vmem [resolvable:$true] %s575
          %581 = dma.hbm_to_vmem [thread:$0]  %s574, 1024, %s576, %s565, 64, 64, 4
        $region56: #{tpu_custom_call.1} parent=39 // pred_fallthru
          _
        // Predicated region
        $region57: #{tpu_custom_call.1} parent=39 // pred_check
          %p582 = pneg %p161
        $region58: #{tpu_custom_call.1} parent=39 // pred_check_branch
          %584 = sbr.rel (%p582) target = $region60
        $region59: #{tpu_custom_call.1} parent=39 // pred_region
          %p585 = scmp.lt.s32.totalorder %s37, 1
          %s586 = scalar_select %p585, %s37, 1
          %s587 = scalar_lea.vmem %s5, %s586
        $region60: #{tpu_custom_call.1} parent=39 // pred_fallthru
          _
        // Predicated region
        $region61: #{tpu_custom_call.1} parent=39 // pred_check
          %p588 = pneg %p187
        $region62: #{tpu_custom_call.1} parent=39 // pred_check_branch
          %590 = sbr.rel (%p588) target = $region64
        $region63: #{tpu_custom_call.1} parent=39 // pred_region
          %s591 = sand.u32 %s37, 1
          %s592 = scalar_lea.sflag [#allocation13], %s591
          %s593 = sand.u32 %s177, 1
          %s594 = smul.addr %s593, 128
          %s595 = scalar_lea.vmem [#allocation12], %s594
          %s597 = ssub.s32 2048, 2048
          %598 = vsyncadd %s592, %s597
          %s599 = smul.addr %s37, 32
          %s600 = smul.addr %s599, 64
          %s601 = scalar_lea.hbm %s6, %s600
          %s602 = sshll.u32 %s595, 4
          %s603 = int_to_ptr.vmem [resolvable:$true] %s602
          %608 = dma.hbm_to_vmem [thread:$0]  %s601, 2048, %s603, %s592, 128, 128, 8
        $region64: #{tpu_custom_call.1} parent=39 // pred_fallthru
          _
        // Predicated region
        $region65: #{tpu_custom_call.1} parent=39 // pred_check
          %p609 = pneg %p213
        $region66: #{tpu_custom_call.1} parent=39 // pred_check_branch
          %611 = sbr.rel (%p609) target = $region68
        $region67: #{tpu_custom_call.1} parent=39 // pred_region
          %p612 = scmp.lt.s32.totalorder %s37, 1
          %s613 = scalar_select %p612, %s37, 1
          %s614 = smul.addr %s613, 2
          %s615 = scalar_lea.vmem %s7, %s614
        $region68: #{tpu_custom_call.1} parent=39 // pred_fallthru
          _
        // Predicated region
        $region69: #{tpu_custom_call.1} parent=39 // pred_check
          %p616 = pneg %p239
        $region70: #{tpu_custom_call.1} parent=39 // pred_check_branch
          %618 = sbr.rel (%p616) target = $region72
        $region71: #{tpu_custom_call.1} parent=39 // pred_region
          %p619 = scmp.lt.s32.totalorder %s37, 1
          %s620 = scalar_select %p619, %s37, 1
          %s621 = scalar_lea.vmem %s8, %s620
        $region72: #{tpu_custom_call.1} parent=39 // pred_fallthru
          _
        // Predicated region
        $region73: #{tpu_custom_call.1} parent=39 // pred_check
          %p622 = pneg %p265
        $region74: #{tpu_custom_call.1} parent=39 // pred_check_branch
          %624 = sbr.rel (%p622) target = $region76
        $region75: #{tpu_custom_call.1} parent=39 // pred_region
          %p625 = scmp.lt.s32.totalorder %s37, 1
          %s626 = scalar_select %p625, %s37, 1
          %s627 = scalar_lea.vmem %s9, %s626
        $region76: #{tpu_custom_call.1} parent=39 // pred_fallthru
          _
        // Predicated region
        $region77: #{tpu_custom_call.1} parent=39 // pred_check
          %p628 = pneg %p291
        $region78: #{tpu_custom_call.1} parent=39 // pred_check_branch
          %630 = sbr.rel (%p628) target = $region80
        $region79: #{tpu_custom_call.1} parent=39 // pred_region
          %s631 = sand.u32 %s37, 1
          %s632 = scalar_lea.sflag [#allocation13], %s631
          %s633 = sand.u32 %s281, 1
          %s634 = smul.addr %s633, 128
          %s635 = scalar_lea.vmem [#allocation14], %s634
          %s637 = ssub.s32 2048, 2048
          %638 = vsyncadd %s632, %s637
          %s639 = smul.addr %s37, 32
          %s640 = smul.addr %s639, 64
          %s641 = scalar_lea.hbm %s10, %s640
          %s642 = sshll.u32 %s635, 4
          %s643 = int_to_ptr.vmem [resolvable:$true] %s642
          %648 = dma.hbm_to_vmem [thread:$0]  %s641, 2048, %s643, %s632, 64, 64, 4
        $region80: #{tpu_custom_call.1} parent=39 // pred_fallthru
          _
        // Predicated region
        $region81: #{tpu_custom_call.1} parent=39 // pred_check
          %p649 = pneg %p317
        $region82: #{tpu_custom_call.1} parent=39 // pred_check_branch
          %651 = sbr.rel (%p649) target = $region84
        $region83: #{tpu_custom_call.1} parent=39 // pred_region
          %p652 = scmp.lt.s32.totalorder %s37, 1
          %s653 = scalar_select %p652, %s37, 1
          %s654 = scalar_lea.vmem %s11, %s653
        $region84: #{tpu_custom_call.1} parent=39 // pred_fallthru
          _
      $region40: #{tpu_custom_call.1} parent=5 // pred_fallthru
        _
      %p655 = scmp.le.s32.totalorder 1, %s37
      %p656 = scmp.lt.s32.totalorder %s37, 3
      %p657 = pnand %p655, %p656
      %p658 = pneg %p657
      // Predicated region
      $region85: #{tpu_custom_call.1} parent=5 // pred_check
        _
      $region86: #{tpu_custom_call.1} parent=5 // pred_check_branch
        %660 = sbr.rel (%p657) target = $region88
      $region87: #{tpu_custom_call.1} parent=5 // pred_region
        %s661 = ssub.s32 %s37, 1
        %s662 = sand.u32 %s76, 1
        %s663 = scalar_lea.sflag [#allocation7], %s662
        %s664 = sand.u32 %s76, 1
        %s665 = scalar_lea.vmem [#allocation6], %s664
        // Predicated region
        $region89: #{tpu_custom_call.1} parent=87 // pred_check
          %p666 = pneg %p89
        $region90: #{tpu_custom_call.1} parent=87 // pred_check_branch
          %668 = sbr.rel (%p666) target = $region92
        $region91: #{tpu_custom_call.1} parent=87 // pred_region
          %669 = dma.done %s663, 16
        $region92: #{tpu_custom_call.1} parent=87 // pred_fallthru
          _
        %s670 = sand.u32 %s42, 1
        %s671 = scalar_lea.sflag [#allocation10], %s670
        %s672 = sand.u32 %s102, 1
        %s673 = smul.addr %s672, 192
        %s674 = scalar_lea.vmem [#allocation9], %s673
        // Predicated region
        $region93: #{tpu_custom_call.1} parent=87 // pred_check
          %p675 = pneg %p115
        $region94: #{tpu_custom_call.1} parent=87 // pred_check_branch
          %677 = sbr.rel (%p675) target = $region96
        $region95: #{tpu_custom_call.1} parent=87 // pred_region
          %678 = dma.done %s671, 3072
        $region96: #{tpu_custom_call.1} parent=87 // pred_fallthru
          _
        %s679 = sand.u32 %s42, 1
        %s680 = scalar_lea.sflag [#allocation10], %s679
        %s681 = sand.u32 %s128, 1
        %s682 = smul.addr %s681, 64
        %s683 = scalar_lea.vmem [#allocation11], %s682
        // Predicated region
        $region97: #{tpu_custom_call.1} parent=87 // pred_check
          %p684 = pneg %p141
        $region98: #{tpu_custom_call.1} parent=87 // pred_check_branch
          %686 = sbr.rel (%p684) target = $region100
        $region99: #{tpu_custom_call.1} parent=87 // pred_region
          %687 = dma.done %s680, 1024
        $region100: #{tpu_custom_call.1} parent=87 // pred_fallthru
          _
        %s688 = sand.u32 %s42, 1
        %s689 = scalar_lea.sflag [#allocation13], %s688
        %s690 = sand.u32 %s180, 1
        %s691 = smul.addr %s690, 128
        %s692 = scalar_lea.vmem [#allocation12], %s691
        // Predicated region
        $region101: #{tpu_custom_call.1} parent=87 // pred_check
          %p693 = pneg %p193
        $region102: #{tpu_custom_call.1} parent=87 // pred_check_branch
          %695 = sbr.rel (%p693) target = $region104
        $region103: #{tpu_custom_call.1} parent=87 // pred_region
          %696 = dma.done %s689, 2048
        $region104: #{tpu_custom_call.1} parent=87 // pred_fallthru
          _
        %s697 = sand.u32 %s42, 1
        %s698 = scalar_lea.sflag [#allocation13], %s697
        %s699 = sand.u32 %s284, 1
        %s700 = smul.addr %s699, 128
        %s701 = scalar_lea.vmem [#allocation14], %s700
        // Predicated region
        $region105: #{tpu_custom_call.1} parent=87 // pred_check
          %p702 = pneg %p297
        $region106: #{tpu_custom_call.1} parent=87 // pred_check_branch
          %704 = sbr.rel (%p702) target = $region108
        $region107: #{tpu_custom_call.1} parent=87 // pred_region
          %705 = dma.done %s698, 2048
        $region108: #{tpu_custom_call.1} parent=87 // pred_fallthru
          _
        // Predicated region
        $region109: #{tpu_custom_call.1} parent=87 // pred_check
          %p706 = pneg %p428
        $region110: #{tpu_custom_call.1} parent=87 // pred_check_branch
          %708 = sbr.rel (%p706) target = $region112
        $region111: #{tpu_custom_call.1} parent=87 // pred_region
          %709 = dma.done [#allocation16], 1024
        $region112: #{tpu_custom_call.1} parent=87 // pred_fallthru
          _
        %p710 = scmp.lt.s32.totalorder %s42, 1
        %s711 = scalar_select %p710, %s42, 1
        %s712 = scalar_lea.vmem %s1, %s711
        %p713 = pneg %p63
        %p714 = pneg %p60
        %s715 = sand.u32 %s76, 1
        %s716 = scalar_lea.sflag [#allocation7], %s715
        %s717 = sand.u32 %s76, 1
        %s718 = scalar_lea.vmem [#allocation6], %s717
        %p719 = pneg %p89
        %p720 = pneg %p86
        %s721 = sand.u32 %s42, 1
        %s722 = scalar_lea.sflag [#allocation10], %s721
        %s723 = sand.u32 %s102, 1
        %s724 = smul.addr %s723, 192
        %s725 = scalar_lea.vmem [#allocation9], %s724
        %p726 = pneg %p115
        %p727 = pneg %p112
        %s728 = sand.u32 %s42, 1
        %s729 = scalar_lea.sflag [#allocation10], %s728
        %s730 = sand.u32 %s128, 1
        %s731 = smul.addr %s730, 64
        %s732 = scalar_lea.vmem [#allocation11], %s731
        %p733 = pneg %p141
        %p734 = pneg %p138
        %p735 = scmp.lt.s32.totalorder %s42, 1
        %s736 = scalar_select %p735, %s42, 1
        %s737 = scalar_lea.vmem %s5, %s736
        %p738 = pneg %p167
        %p739 = pneg %p164
        %s740 = sand.u32 %s42, 1
        %s741 = scalar_lea.sflag [#allocation13], %s740
        %s742 = sand.u32 %s180, 1
        %s743 = smul.addr %s742, 128
        %s744 = scalar_lea.vmem [#allocation12], %s743
        %p745 = pneg %p193
        %p746 = pneg %p190
        %p747 = scmp.lt.s32.totalorder %s42, 1
        %s748 = scalar_select %p747, %s42, 1
        %s749 = smul.addr %s748, 2
        %s750 = scalar_lea.vmem %s7, %s749
        %p751 = pneg %p219
        %p752 = pneg %p216
        %p753 = scmp.lt.s32.totalorder %s42, 1
        %s754 = scalar_select %p753, %s42, 1
        %s755 = scalar_lea.vmem %s8, %s754
        %p756 = pneg %p245
        %p757 = pneg %p242
        %p758 = scmp.lt.s32.totalorder %s42, 1
        %s759 = scalar_select %p758, %s42, 1
        %s760 = scalar_lea.vmem %s9, %s759
        %p761 = pneg %p271
        %p762 = pneg %p268
        %s763 = sand.u32 %s42, 1
        %s764 = scalar_lea.sflag [#allocation13], %s763
        %s765 = sand.u32 %s284, 1
        %s766 = smul.addr %s765, 128
        %s767 = scalar_lea.vmem [#allocation14], %s766
        %p768 = pneg %p297
        %p769 = pneg %p294
        %p770 = scmp.lt.s32.totalorder %s42, 1
        %s771 = scalar_select %p770, %s42, 1
        %s772 = scalar_lea.vmem %s11, %s771
        %p773 = pneg %p323
        %p774 = pneg %p320
        %p775 = pneg %p344
        %p776 = pneg %p341
        %p777 = pneg %p365
        %p778 = pneg %p362
        %p779 = pneg %p386
        %p780 = pneg %p383
        %p781 = pneg %p407
        %p782 = pneg %p404
        %p783 = pneg %p428
        %p784 = pneg %p425
        %p785 = pneg %p449
        %p786 = pneg %p446
        %p787 = pneg %p470
        %p788 = pneg %p467
        %p789 = scmp.lt.s32.totalorder %s42, 1
        %s790 = scalar_select %p789, %s42, 1
        %s791 = scalar_lea.vmem %s1, %s790
        %p792 = scmp.lt.s32.totalorder %s42, 1
        %s793 = scalar_select %p792, %s42, 1
        %s794 = scalar_lea.vmem %s5, %s793
        %p795 = scmp.lt.s32.totalorder %s42, 1
        %s796 = scalar_select %p795, %s42, 1
        %s797 = smul.addr %s796, 2
        %s798 = scalar_lea.vmem %s7, %s797
        %p799 = scmp.lt.s32.totalorder %s42, 1
        %s800 = scalar_select %p799, %s42, 1
        %s801 = scalar_lea.vmem %s8, %s800
        %p802 = scmp.lt.s32.totalorder %s42, 1
        %s803 = scalar_select %p802, %s42, 1
        %s804 = scalar_lea.vmem %s9, %s803
        %p805 = scmp.lt.s32.totalorder %s42, 1
        %s806 = scalar_select %p805, %s42, 1
        %s807 = scalar_lea.vmem %s11, %s806
        %p809 = scmp.eq.s32.totalorder %s42, 0
        // Predicated region
        $region113: #{tpu_custom_call.1} parent=87 // pred_check
          %p810 = pneg %p809
        $region114: #{tpu_custom_call.1} parent=87 // pred_check_branch
          %812 = sbr.rel (%p810) target = $region116
        $region115: #{tpu_custom_call.1} parent=87 // pred_region
          $region117: #{tpu_custom_call.1} parent=115
            #allocation18 [shape = 's32[1]{0}', space=sflag, size = 0x4, scoped, tag = 'scoped memory for tpu_custom_call.1']
            // Predicated region
            $region118: #{tpu_custom_call.1} parent=117 // pred_check
              _
            $region119: #{tpu_custom_call.1} parent=117 // pred_check_branch
              %814 = sbr.rel target = $region121
            $region120: #{tpu_custom_call.1} parent=117 // pred_region
              %815 = sst [smem:[#allocation21]] [#allocation20]
              %816 = sst [smem:[#allocation22]] [#allocation19]
            $region121: #{tpu_custom_call.1} parent=117 // pred_fallthru
              _
            %818 = shalt.err (0)
            %s820 = sshll.u32 [#allocation2], 4
            %s821 = int_to_ptr.vmem [resolvable:$true] %s820
            %823 = dma.hbm_to_vmem [thread:$0]  %s0, 256, %s821, [#allocation18]
            %s824 = smul.u32 16, 1
            %s825 = sshll.u32 %s824, 4
            %826 = dma.done [#allocation18], %s825
        $region116: #{tpu_custom_call.1} parent=87 // pred_fallthru
          _
        %v827 = vld [vmem:[#allocation2] sm:$0xff]
        %v828 = vld [vmem:[#allocation2 + $0x8] sm:$0xff]
        %v829 = vld [vmem:[%s791] sm:$0x1]
        %v830 = vld [vmem:[%s665] sm:$0x1]
        %831 = vadd.xlane.f32.xlu0 %v827
        %v832 = vpop.xlane.xlu0 %831
        %833 = vadd.xlane.f32.xlu0 %v828
        %v834 = vpop.xlane.xlu0 %833
        %v835 = vrcp.pop 128.0
        %v836 = vmul.f32 %v832, %v835
        %v837 = vmul.f32 %v834, %v835
        %v838 = vsub.f32 %v827, %v836
        %v839 = vsub.f32 %v828, %v837
        %v840 = vmul.f32 %v838, %v838
        %v841 = vmul.f32 %v839, %v839
        %842 = vadd.xlane.f32.xlu0 %v840
        %v843 = vpop.xlane.xlu0 %842
        %844 = vadd.xlane.f32.xlu0 %v841
        %v845 = vpop.xlane.xlu0 %844
        %v846 = vmul.f32 %v843, %v835
        %v847 = vmul.f32 %v845, %v835
        %v848 = vadd.f32 %v846, 1e-05
        %v849 = vadd.f32 %v847, 1e-05
        %v850 = vrsqrt.pop %v848
        %v851 = vrsqrt.pop %v849
        %v852 = vmul.f32 %v838, %v850
        %v853 = vmul.f32 %v839, %v851
        %v855 = vlaneseq
        %v856 = vshrl.u32 %v855, 7
        %v857 = vsub.s32 0, %v856
        %v858 = vrot.slane %v829, %v857
        %v860 = vmul.f32 %v852, %v858
        %v861 = vmul.f32 %v853, %v858
        %v863 = vlaneseq
        %v864 = vshrl.u32 %v863, 7
        %v865 = vsub.s32 0, %v864
        %v866 = vrot.slane %v830, %v865
        %v868 = vadd.f32 %v860, %v866
        %v869 = vadd.f32 %v861, %v866
        %v870 = vpack.c.bf16 %v869, %v868
        %v871 = vld [vmem:[%s674] sm:$0xff]
        %v872 = vld [vmem:[%s674 + $0x8] sm:$0xf]
        %v873 = vld [vmem:[%s674 + $0xc] sm:$0xff]
        %v874 = vld [vmem:[%s674 + $0x14] sm:$0xf]
        %v875 = vld [vmem:[%s674 + $0x18] sm:$0xff]
        %v876 = vld [vmem:[%s674 + $0x20] sm:$0xf]
        %v877 = vld [vmem:[%s674 + $0x24] sm:$0xff]
        %v878 = vld [vmem:[%s674 + $0x2c] sm:$0xf]
        %v879 = vld [vmem:[%s674 + $0x30] sm:$0xff]
        %v880 = vld [vmem:[%s674 + $0x38] sm:$0xf]
        %v881 = vld [vmem:[%s674 + $0x3c] sm:$0xff]
        %v882 = vld [vmem:[%s674 + $0x44] sm:$0xf]
        %v883 = vld [vmem:[%s674 + $0x48] sm:$0xff]
        %v884 = vld [vmem:[%s674 + $0x50] sm:$0xf]
        %v885 = vld [vmem:[%s674 + $0x54] sm:$0xff]
        %v886 = vld [vmem:[%s674 + $0x5c] sm:$0xf]
        %v887 = vld [vmem:[%s674 + $0x60] sm:$0xff]
        %v888 = vld [vmem:[%s674 + $0x68] sm:$0xf]
        %v889 = vld [vmem:[%s674 + $0x6c] sm:$0xff]
        %v890 = vld [vmem:[%s674 + $0x74] sm:$0xf]
        %v891 = vld [vmem:[%s674 + $0x78] sm:$0xff]
        %v892 = vld [vmem:[%s674 + $0x80] sm:$0xf]
        %v893 = vld [vmem:[%s674 + $0x84] sm:$0xff]
        %v894 = vld [vmem:[%s674 + $0x8c] sm:$0xf]
        %v895 = vld [vmem:[%s674 + $0x90] sm:$0xff]
        %v896 = vld [vmem:[%s674 + $0x98] sm:$0xf]
        %v897 = vld [vmem:[%s674 + $0x9c] sm:$0xff]
        %v898 = vld [vmem:[%s674 + $0xa4] sm:$0xf]
        %v899 = vld [vmem:[%s674 + $0xa8] sm:$0xff]
        %v900 = vld [vmem:[%s674 + $0xb0] sm:$0xf]
        %v901 = vld [vmem:[%s674 + $0xb4] sm:$0xff]
        %v902 = vld [vmem:[%s674 + $0xbc] sm:$0xf]
        %v935 = vunpack.c.l.b16 %v871
        %v936 = vunpack.c.h.b16 %v871
        %v937 = vunpack.c.l.b16 %v872
        %v938 = vunpack.c.l.b16 %v873
        %v939 = vunpack.c.h.b16 %v873
        %v940 = vunpack.c.l.b16 %v874
        %v941 = vunpack.c.l.b16 %v875
        %v942 = vunpack.c.h.b16 %v875
        %v943 = vunpack.c.l.b16 %v876
        %v944 = vunpack.c.l.b16 %v877
        %v945 = vunpack.c.h.b16 %v877
        %v946 = vunpack.c.l.b16 %v878
        %v947 = vunpack.c.l.b16 %v879
        %v948 = vunpack.c.h.b16 %v879
        %v949 = vunpack.c.l.b16 %v880
        %v950 = vunpack.c.l.b16 %v881
        %v951 = vunpack.c.h.b16 %v881
        %v952 = vunpack.c.l.b16 %v882
        %v953 = vunpack.c.l.b16 %v883
        %v954 = vunpack.c.h.b16 %v883
        %v955 = vunpack.c.l.b16 %v884
        %v956 = vunpack.c.l.b16 %v885
        %v957 = vunpack.c.h.b16 %v885
        %v958 = vunpack.c.l.b16 %v886
        %v959 = vunpack.c.l.b16 %v887
        %v960 = vunpack.c.h.b16 %v887
        %v961 = vunpack.c.l.b16 %v888
        %v962 = vunpack.c.l.b16 %v889
        %v963 = vunpack.c.h.b16 %v889
        %v964 = vunpack.c.l.b16 %v890
        %v965 = vunpack.c.l.b16 %v891
        %v966 = vunpack.c.h.b16 %v891
        %v967 = vunpack.c.l.b16 %v892
        %v968 = vunpack.c.l.b16 %v893
        %v969 = vunpack.c.h.b16 %v893
        %v970 = vunpack.c.l.b16 %v894
        %v971 = vunpack.c.l.b16 %v895
        %v972 = vunpack.c.h.b16 %v895
        %v973 = vunpack.c.l.b16 %v896
        %v974 = vunpack.c.l.b16 %v897
        %v975 = vunpack.c.h.b16 %v897
        %v976 = vunpack.c.l.b16 %v898
        %v977 = vunpack.c.l.b16 %v899
        %v978 = vunpack.c.h.b16 %v899
        %v979 = vunpack.c.l.b16 %v900
        %v980 = vunpack.c.l.b16 %v901
        %v981 = vunpack.c.h.b16 %v901
        %v982 = vunpack.c.l.b16 %v902
        %v983 = vpack.c.b16 %v938, %v935
        %v984 = vpack.c.b16 %v939, %v936
        %v985 = vpack.c.b16 %v940, %v937
        %v986 = vpack.c.b16 %v944, %v941
        %v987 = vpack.c.b16 %v945, %v942
        %v988 = vpack.c.b16 %v946, %v943
        %v989 = vpack.c.b16 %v950, %v947
        %v990 = vpack.c.b16 %v951, %v948
        %v991 = vpack.c.b16 %v952, %v949
        %v992 = vpack.c.b16 %v956, %v953
        %v993 = vpack.c.b16 %v957, %v954
        %v994 = vpack.c.b16 %v958, %v955
        %v995 = vpack.c.b16 %v962, %v959
        %v996 = vpack.c.b16 %v963, %v960
        %v997 = vpack.c.b16 %v964, %v961
        %v998 = vpack.c.b16 %v968, %v965
        %v999 = vpack.c.b16 %v969, %v966
        %v1000 = vpack.c.b16 %v970, %v967
        %v1001 = vpack.c.b16 %v974, %v971
        %v1002 = vpack.c.b16 %v975, %v972
        %v1003 = vpack.c.b16 %v976, %v973
        %v1004 = vpack.c.b16 %v980, %v977
        %v1005 = vpack.c.b16 %v981, %v978
        %v1006 = vpack.c.b16 %v982, %v979
        %1031 = vmatprep.subr.bf16.mxu0 %v1005
        %1032 = vmatpush1.bf16.msra.mxu0 %v1004
        %1033 = vmatprep.subr.bf16.mxu0 %v1002
        %1034 = vmatpush1.bf16.msra.mxu0 %v1001
        %1035 = vmatprep.subr.bf16.mxu0 %v999
        %1036 = vmatpush1.bf16.msra.mxu0 %v998
        %1037 = vmatprep.subr.bf16.mxu0 %v996
        %1038 = vmatpush1.bf16.msra.mxu0 %v995
        %1039 = vmatprep.subr.bf16.mxu0 %v993
        %1040 = vmatpush1.bf16.msra.mxu0 %v992
        %1041 = vmatprep.subr.bf16.mxu0 %v990
        %1042 = vmatpush1.bf16.msra.mxu0 %v989
        %1043 = vmatprep.subr.bf16.mxu0 %v987
        %1044 = vmatpush1.bf16.msra.mxu0 %v986
        %1045 = vmatprep.subr.bf16.mxu0 %v984
        %1046 = vmatpush1.bf16.msra.mxu0 %v983
        %1047 = vmatprep.subr.bf16.mxu0 0
        %1048 = vmatpush2.bf16.msra.mxu0 0
        %1049 = vmatprep.subr.bf16.mxu0 0
        %1050 = vmatpush2.bf16.msra.mxu0 0
        %1051 = vmatprep.subr.bf16.mxu0 0
        %1052 = vmatpush2.bf16.msra.mxu0 0
        %1053 = vmatprep.subr.bf16.mxu0 0
        %1054 = vmatpush2.bf16.msra.mxu0 0
        %1055 = vmatprep.subr.bf16.mxu0 0
        %1056 = vmatpush2.bf16.msra.mxu0 0
        %1057 = vmatprep.subr.bf16.mxu0 0
        %1058 = vmatpush2.bf16.msra.mxu0 0
        %1059 = vmatprep.subr.bf16.mxu0 0
        %1060 = vmatpush2.bf16.msra.mxu0 0
        %1061 = vmatprep.subr.bf16.mxu0 0
        %1062 = vmatpush2.bf16.msra.mxu0 0
        %1063 = vmatprep.mubr.bf16.mxu0 0
        %1064 = vmatmul.mubr.bf16.gmra.mxu0 %v870
        %v1065 = vpop.f32.mrf.mxu0
        %v1066 = vadd.f32 0.0, %v1065
        %v1067 = vpop.f32.mrf.mxu0
        %v1068 = vadd.f32 0.0, %v1067
        %v1069 = vpop.f32.mrf.mxu0
        %v1070 = vadd.f32 0.0, %v1069
        %v1071 = vpop.f32.mrf.mxu0
        %v1072 = vadd.f32 0.0, %v1071
        %1073 = vdwg.mxu0
        %1074 = vmatprep.subr.bf16.mxu0 0
        %1075 = vmatpush1.bf16.msra.mxu0 %v1006
        %1076 = vmatprep.subr.bf16.mxu0 0
        %1077 = vmatpush1.bf16.msra.mxu0 %v1003
        %1078 = vmatprep.subr.bf16.mxu0 0
        %1079 = vmatpush1.bf16.msra.mxu0 %v1000
        %1080 = vmatprep.subr.bf16.mxu0 0
        %1081 = vmatpush1.bf16.msra.mxu0 %v997
        %1082 = vmatprep.subr.bf16.mxu0 0
        %1083 = vmatpush1.bf16.msra.mxu0 %v994
        %1084 = vmatprep.subr.bf16.mxu0 0
        %1085 = vmatpush1.bf16.msra.mxu0 %v991
        %1086 = vmatprep.subr.bf16.mxu0 0
        %1087 = vmatpush1.bf16.msra.mxu0 %v988
        %1088 = vmatprep.subr.bf16.mxu0 0
        %1089 = vmatpush1.bf16.msra.mxu0 %v985
        %1090 = vmatprep.subr.bf16.mxu0 0
        %1091 = vmatpush2.bf16.msra.mxu0 0
        %1092 = vmatprep.subr.bf16.mxu0 0
        %1093 = vmatpush2.bf16.msra.mxu0 0
        %1094 = vmatprep.subr.bf16.mxu0 0
        %1095 = vmatpush2.bf16.msra.mxu0 0
        %1096 = vmatprep.subr.bf16.mxu0 0
        %1097 = vmatpush2.bf16.msra.mxu0 0
        %1098 = vmatprep.subr.bf16.mxu0 0
        %1099 = vmatpush2.bf16.msra.mxu0 0
        %1100 = vmatprep.subr.bf16.mxu0 0
        %1101 = vmatpush2.bf16.msra.mxu0 0
        %1102 = vmatprep.subr.bf16.mxu0 0
        %1103 = vmatpush2.bf16.msra.mxu0 0
        %1104 = vmatprep.subr.bf16.mxu0 0
        %1105 = vmatpush2.bf16.msra.mxu0 0
        %1106 = vmatprep.mubr.bf16.mxu0 0
        %1107 = vmatmul.mubr.bf16.gmra.mxu0 %v870
        %v1108 = vpop.f32.mrf.mxu0
        %v1109 = vadd.f32 0.0, %v1108
        %v1110 = vpop.f32.mrf.mxu0
        %v1111 = vpop.f32.mrf.mxu0
        %v1112 = vadd.f32 0.0, %v1111
        %v1113 = vpop.f32.mrf.mxu0
        %1114 = vdwg.mxu0
        %1115 = vst [vmem:[#allocation3] sm:$0xff] %v1066
        %1116 = vst [vmem:[#allocation3 + $0x8] sm:$0xff] %v1068
        %1117 = vst [vmem:[#allocation3 + $0x10] sm:$0xff] %v1109
        %1118 = vst [vmem:[#allocation3 + $0x18] sm:$0xff] %v1070
        %1119 = vst [vmem:[#allocation3 + $0x20] sm:$0xff] %v1072
        %1120 = vst [vmem:[#allocation3 + $0x28] sm:$0xff] %v1112
        loop: start=0, step=1, limit=2
        $region122: #{tpu_custom_call.1} parent=87 // loop_pre_header
          _
        $region123: #{tpu_custom_call.1} parent=87 // loop_header
          %s1122 = sphi 0, %s1126
          %p1123 = scmp.ge.s32.totalorder %s1122, 2
        $region124: #{tpu_custom_call.1} parent=87 // loop_header_branch
          %1125 = sbr.rel (%p1123) target = $region128
        $region125: #{tpu_custom_call.1} parent=87 // loop_body
          %s1127 = smul.u32 %s1122, 8
          %s1128 = sshra.s32 %s1127, 3
          %s1129 = sand.u32 %s1127, 7
          %s1130 = smul.u32 %s1128, 3
          %s1131 = smul.addr %s1130, 8
          %s1132 = scalar_lea.vmem [#allocation3], %s1131
          %v1133 = vld [vmem:[%s1132] sm:$0xff]
          %v1134 = vpack.c.bf16 %v1133, %v1133
          %v1135 = vld [vmem:[%s1132 + $0x8] sm:$0xff]
          %v1136 = vpack.c.bf16 %v1135, %v1135
          %v1137 = vld [vmem:[%s1132 + $0x10] sm:$0xff]
          %v1138 = vpack.c.bf16 %v1137, %v1137
          %vm1139 = vcmask 261120
          %v1141 = vsel %vm1139, %v1134, 0
          %v1144 = vsel %vm1139, %v1136, 0
          %1146 = vmatprep.subr.bf16.mxu0 0
          %1147 = vmatpush1.bf16.xpose.msra.mxu0 0
          %1148 = vmatprep.subr.bf16.mxu0 0
          %1149 = vmatpush1.bf16.xpose.msra.mxu0 0
          %1150 = vmatprep.subr.bf16.mxu0 0
          %1151 = vmatpush1.bf16.xpose.msra.mxu0 0
          %1152 = vmatprep.subr.bf16.mxu0 0
          %1153 = vmatpush1.bf16.xpose.msra.mxu0 0
          %1154 = vmatprep.subr.bf16.mxu0 0
          %1155 = vmatpush1.bf16.xpose.msra.mxu0 0
          %1156 = vmatprep.subr.bf16.mxu0 0
          %1157 = vmatpush1.bf16.xpose.msra.mxu0 0
          %1158 = vmatprep.subr.bf16.mxu0 0
          %1159 = vmatpush1.bf16.xpose.msra.mxu0 0
          %1160 = vmatprep.subr.bf16.mxu0 0
          %1161 = vmatpush1.bf16.xpose.msra.mxu0 %v1144
          %1162 = vmatprep.subr.bf16.mxu0 0
          %1163 = vmatpush2.bf16.xpose.msra.mxu0 0
          %1164 = vmatprep.subr.bf16.mxu0 0
          %1165 = vmatpush2.bf16.xpose.msra.mxu0 0
          %1166 = vmatprep.subr.bf16.mxu0 0
          %1167 = vmatpush2.bf16.xpose.msra.mxu0 0
          %1168 = vmatprep.subr.bf16.mxu0 0
          %1169 = vmatpush2.bf16.xpose.msra.mxu0 0
          %1170 = vmatprep.subr.bf16.mxu0 0
          %1171 = vmatpush2.bf16.xpose.msra.mxu0 0
          %1172 = vmatprep.subr.bf16.mxu0 0
          %1173 = vmatpush2.bf16.xpose.msra.mxu0 0
          %1174 = vmatprep.subr.bf16.mxu0 0
          %1175 = vmatpush2.bf16.xpose.msra.mxu0 0
          %1176 = vmatprep.subr.bf16.mxu0 0
          %1177 = vmatpush2.bf16.xpose.msra.mxu0 0
          %1178 = vmatprep.mubr.bf16.mxu0 0
          %1179 = vmatmul.mubr.bf16.gmra.mxu0 %v1141
          %v1180 = vpop.f32.mrf.mxu0
          %v1181 = vadd.f32 0.0, %v1180
          %v1182 = vpop.f32.mrf.mxu0
          %v1183 = vpop.f32.mrf.mxu0
          %v1184 = vpop.f32.mrf.mxu0
          %1185 = vdwg.mxu0
          %vm1186 = vcmask 64512
          %v1187 = vsel %vm1186, %v1181, -inf
          %1188 = vmax.xlane.f32.xlu0 %v1187
          %v1189 = vpop.xlane.xlu0 %1188
          %v1190 = vsub.f32 %v1181, %v1189
          %v1191 = vmul.f32 %v1190, 1.442695
          %v1192 = vpow.pop %v1191
          %v1193 = vsel %vm1186, %v1192, 0.0
          %1194 = vadd.xlane.f32.xlu0 %v1193
          %v1195 = vpop.xlane.xlu0 %1194
          %v1196 = vrcp.pop %v1195
          %v1197 = vmul.f32 %v1192, %v1196
          %v1198 = vpack.c.bf16 %v1197, %v1197
          %v1200 = vsel %vm1186, %v1198, 0
          %vm1202 = vcmask 1043456
          %v1204 = vsel %vm1202, %v1138, 0
          %1206 = vmatprep.subr.bf16.mxu0 0
          %1207 = vmatpush1.bf16.msra.mxu0 0
          %1208 = vmatprep.subr.bf16.mxu0 0
          %1209 = vmatpush1.bf16.msra.mxu0 0
          %1210 = vmatprep.subr.bf16.mxu0 0
          %1211 = vmatpush1.bf16.msra.mxu0 0
          %1212 = vmatprep.subr.bf16.mxu0 0
          %1213 = vmatpush1.bf16.msra.mxu0 0
          %1214 = vmatprep.subr.bf16.mxu0 0
          %1215 = vmatpush1.bf16.msra.mxu0 0
          %1216 = vmatprep.subr.bf16.mxu0 0
          %1217 = vmatpush1.bf16.msra.mxu0 0
          %1218 = vmatprep.subr.bf16.mxu0 0
          %1219 = vmatpush1.bf16.msra.mxu0 0
          %1220 = vmatprep.subr.bf16.mxu0 0
          %1221 = vmatpush1.bf16.msra.mxu0 %v1204
          %1222 = vmatprep.subr.bf16.mxu0 0
          %1223 = vmatpush2.bf16.msra.mxu0 0
          %1224 = vmatprep.subr.bf16.mxu0 0
          %1225 = vmatpush2.bf16.msra.mxu0 0
          %1226 = vmatprep.subr.bf16.mxu0 0
          %1227 = vmatpush2.bf16.msra.mxu0 0
          %1228 = vmatprep.subr.bf16.mxu0 0
          %1229 = vmatpush2.bf16.msra.mxu0 0
          %1230 = vmatprep.subr.bf16.mxu0 0
          %1231 = vmatpush2.bf16.msra.mxu0 0
          %1232 = vmatprep.subr.bf16.mxu0 0
          %1233 = vmatpush2.bf16.msra.mxu0 0
          %1234 = vmatprep.subr.bf16.mxu0 0
          %1235 = vmatpush2.bf16.msra.mxu0 0
          %1236 = vmatprep.subr.bf16.mxu0 0
          %1237 = vmatpush2.bf16.msra.mxu0 0
          %1238 = vmatprep.mubr.bf16.mxu0 0
          %1239 = vmatmul.mubr.bf16.gmra.mxu0 %v1200
          %v1240 = vpop.f32.mrf.mxu0
          %v1241 = vadd.f32 0.0, %v1240
          %v1242 = vpop.f32.mrf.mxu0
          %v1243 = vpop.f32.mrf.mxu0
          %v1244 = vpop.f32.mrf.mxu0
          %1245 = vdwg.mxu0
          %s1246 = scalar_lea.vmem [#allocation4], %s1127
          %1247 = vst.msk [vmem:[%s1246] sm:$0xff] %vm1139, %v1241
          %v1248 = vld [vmem:[%s1132] sm:$0xff]
          %v1249 = vpack.c.bf16 %v1248, %v1248
          %v1250 = vld [vmem:[%s1132 + $0x8] sm:$0xff]
          %v1251 = vpack.c.bf16 %v1250, %v1250
          %v1252 = vld [vmem:[%s1132 + $0x10] sm:$0xff]
          %v1253 = vpack.c.bf16 %v1252, %v1252
          %1255 = vrot.lane.b32.xlu0 %v1249, 96
          %v1256 = vpop.permute.xlu0 %1255
          %1258 = vrot.lane.b32.xlu0 %v1251, 96
          %v1259 = vpop.permute.xlu0 %1258
          %v1261 = vsel %vm1139, %v1256, 0
          %v1264 = vsel %vm1139, %v1259, 0
          %1266 = vmatprep.subr.bf16.mxu0 0
          %1267 = vmatpush1.bf16.xpose.msra.mxu0 0
          %1268 = vmatprep.subr.bf16.mxu0 0
          %1269 = vmatpush1.bf16.xpose.msra.mxu0 0
          %1270 = vmatprep.subr.bf16.mxu0 0
          %1271 = vmatpush1.bf16.xpose.msra.mxu0 0
          %1272 = vmatprep.subr.bf16.mxu0 0
          %1273 = vmatpush1.bf16.xpose.msra.mxu0 0
          %1274 = vmatprep.subr.bf16.mxu0 0
          %1275 = vmatpush1.bf16.xpose.msra.mxu0 0
          %1276 = vmatprep.subr.bf16.mxu0 0
          %1277 = vmatpush1.bf16.xpose.msra.mxu0 0
          %1278 = vmatprep.subr.bf16.mxu0 0
          %1279 = vmatpush1.bf16.xpose.msra.mxu0 0
          %1280 = vmatprep.subr.bf16.mxu0 0
          %1281 = vmatpush1.bf16.xpose.msra.mxu0 %v1264
          %1282 = vmatprep.subr.bf16.mxu0 0
          %1283 = vmatpush2.bf16.xpose.msra.mxu0 0
          %1284 = vmatprep.subr.bf16.mxu0 0
          %1285 = vmatpush2.bf16.xpose.msra.mxu0 0
          %1286 = vmatprep.subr.bf16.mxu0 0
          %1287 = vmatpush2.bf16.xpose.msra.mxu0 0
          %1288 = vmatprep.subr.bf16.mxu0 0
          %1289 = vmatpush2.bf16.xpose.msra.mxu0 0
          %1290 = vmatprep.subr.bf16.mxu0 0
          %1291 = vmatpush2.bf16.xpose.msra.mxu0 0
          %1292 = vmatprep.subr.bf16.mxu0 0
          %1293 = vmatpush2.bf16.xpose.msra.mxu0 0
          %1294 = vmatprep.subr.bf16.mxu0 0
          %1295 = vmatpush2.bf16.xpose.msra.mxu0 0
          %1296 = vmatprep.subr.bf16.mxu0 0
          %1297 = vmatpush2.bf16.xpose.msra.mxu0 0
          %1298 = vmatprep.mubr.bf16.mxu0 0
          %1299 = vmatmul.mubr.bf16.gmra.mxu0 %v1261
          %v1300 = vpop.f32.mrf.mxu0
          %v1301 = vadd.f32 0.0, %v1300
          %v1302 = vpop.f32.mrf.mxu0
          %v1303 = vpop.f32.mrf.mxu0
          %v1304 = vpop.f32.mrf.mxu0
          %1305 = vdwg.mxu0
          %v1306 = vsel %vm1186, %v1301, -inf
          %1307 = vmax.xlane.f32.xlu0 %v1306
          %v1308 = vpop.xlane.xlu0 %1307
          %v1309 = vsub.f32 %v1301, %v1308
          %v1310 = vmul.f32 %v1309, 1.442695
          %v1311 = vpow.pop %v1310
          %v1312 = vsel %vm1186, %v1311, 0.0
          %1313 = vadd.xlane.f32.xlu0 %v1312
          %v1314 = vpop.xlane.xlu0 %1313
          %v1315 = vrcp.pop %v1314
          %v1316 = vmul.f32 %v1311, %v1315
          %v1317 = vpack.c.bf16 %v1316, %v1316
          %1319 = vrot.lane.b32.xlu0 %v1253, 96
          %v1320 = vpop.permute.xlu0 %1319
          %v1322 = vsel %vm1186, %v1317, 0
          %v1325 = vsel %vm1202, %v1320, 0
          %1327 = vmatprep.subr.bf16.mxu0 0
          %1328 = vmatpush1.bf16.msra.mxu0 0
          %1329 = vmatprep.subr.bf16.mxu0 0
          %1330 = vmatpush1.bf16.msra.mxu0 0
          %1331 = vmatprep.subr.bf16.mxu0 0
          %1332 = vmatpush1.bf16.msra.mxu0 0
          %1333 = vmatprep.subr.bf16.mxu0 0
          %1334 = vmatpush1.bf16.msra.mxu0 0
          %1335 = vmatprep.subr.bf16.mxu0 0
          %1336 = vmatpush1.bf16.msra.mxu0 0
          %1337 = vmatprep.subr.bf16.mxu0 0
          %1338 = vmatpush1.bf16.msra.mxu0 0
          %1339 = vmatprep.subr.bf16.mxu0 0
          %1340 = vmatpush1.bf16.msra.mxu0 0
          %1341 = vmatprep.subr.bf16.mxu0 0
          %1342 = vmatpush1.bf16.msra.mxu0 %v1325
          %1343 = vmatprep.subr.bf16.mxu0 0
          %1344 = vmatpush2.bf16.msra.mxu0 0
          %1345 = vmatprep.subr.bf16.mxu0 0
          %1346 = vmatpush2.bf16.msra.mxu0 0
          %1347 = vmatprep.subr.bf16.mxu0 0
          %1348 = vmatpush2.bf16.msra.mxu0 0
          %1349 = vmatprep.subr.bf16.mxu0 0
          %1350 = vmatpush2.bf16.msra.mxu0 0
          %1351 = vmatprep.subr.bf16.mxu0 0
          %1352 = vmatpush2.bf16.msra.mxu0 0
          %1353 = vmatprep.subr.bf16.mxu0 0
          %1354 = vmatpush2.bf16.msra.mxu0 0
          %1355 = vmatprep.subr.bf16.mxu0 0
          %1356 = vmatpush2.bf16.msra.mxu0 0
          %1357 = vmatprep.subr.bf16.mxu0 0
          %1358 = vmatpush2.bf16.msra.mxu0 0
          %1359 = vmatprep.mubr.bf16.mxu0 0
          %1360 = vmatmul.mubr.bf16.gmra.mxu0 %v1322
          %v1361 = vpop.f32.mrf.mxu0
          %v1362 = vadd.f32 0.0, %v1361
          %v1363 = vpop.f32.mrf.mxu0
          %v1364 = vpop.f32.mrf.mxu0
          %v1365 = vpop.f32.mrf.mxu0
          %1366 = vdwg.mxu0
          %1368 = vrot.lane.b32.xlu0 %v1362, 32
          %v1369 = vpop.permute.xlu0 %1368
          %vm1371 = vcmask 523520
          %1372 = vst.msk [vmem:[%s1246] sm:$0xff] %vm1371, %v1369
          %v1373 = vld [vmem:[%s1132] sm:$0xff]
          %v1374 = vpack.c.bf16 %v1373, %v1373
          %v1375 = vld [vmem:[%s1132 + $0x8] sm:$0xff]
          %v1376 = vpack.c.bf16 %v1375, %v1375
          %v1377 = vld [vmem:[%s1132 + $0x10] sm:$0xff]
          %v1378 = vpack.c.bf16 %v1377, %v1377
          %1380 = vrot.lane.b32.xlu0 %v1374, 64
          %v1381 = vpop.permute.xlu0 %1380
          %1383 = vrot.lane.b32.xlu0 %v1376, 64
          %v1384 = vpop.permute.xlu0 %1383
          %v1386 = vsel %vm1139, %v1381, 0
          %v1389 = vsel %vm1139, %v1384, 0
          %1391 = vmatprep.subr.bf16.mxu0 0
          %1392 = vmatpush1.bf16.xpose.msra.mxu0 0
          %1393 = vmatprep.subr.bf16.mxu0 0
          %1394 = vmatpush1.bf16.xpose.msra.mxu0 0
          %1395 = vmatprep.subr.bf16.mxu0 0
          %1396 = vmatpush1.bf16.xpose.msra.mxu0 0
          %1397 = vmatprep.subr.bf16.mxu0 0
          %1398 = vmatpush1.bf16.xpose.msra.mxu0 0
          %1399 = vmatprep.subr.bf16.mxu0 0
          %1400 = vmatpush1.bf16.xpose.msra.mxu0 0
          %1401 = vmatprep.subr.bf16.mxu0 0
          %1402 = vmatpush1.bf16.xpose.msra.mxu0 0
          %1403 = vmatprep.subr.bf16.mxu0 0
          %1404 = vmatpush1.bf16.xpose.msra.mxu0 0
          %1405 = vmatprep.subr.bf16.mxu0 0
          %1406 = vmatpush1.bf16.xpose.msra.mxu0 %v1389
          %1407 = vmatprep.subr.bf16.mxu0 0
          %1408 = vmatpush2.bf16.xpose.msra.mxu0 0
          %1409 = vmatprep.subr.bf16.mxu0 0
          %1410 = vmatpush2.bf16.xpose.msra.mxu0 0
          %1411 = vmatprep.subr.bf16.mxu0 0
          %1412 = vmatpush2.bf16.xpose.msra.mxu0 0
          %1413 = vmatprep.subr.bf16.mxu0 0
          %1414 = vmatpush2.bf16.xpose.msra.mxu0 0
          %1415 = vmatprep.subr.bf16.mxu0 0
          %1416 = vmatpush2.bf16.xpose.msra.mxu0 0
          %1417 = vmatprep.subr.bf16.mxu0 0
          %1418 = vmatpush2.bf16.xpose.msra.mxu0 0
          %1419 = vmatprep.subr.bf16.mxu0 0
          %1420 = vmatpush2.bf16.xpose.msra.mxu0 0
          %1421 = vmatprep.subr.bf16.mxu0 0
          %1422 = vmatpush2.bf16.xpose.msra.mxu0 0
          %1423 = vmatprep.mubr.bf16.mxu0 0
          %1424 = vmatmul.mubr.bf16.gmra.mxu0 %v1386
          %v1425 = vpop.f32.mrf.mxu0
          %v1426 = vadd.f32 0.0, %v1425
          %v1427 = vpop.f32.mrf.mxu0
          %v1428 = vpop.f32.mrf.mxu0
          %v1429 = vpop.f32.mrf.mxu0
          %1430 = vdwg.mxu0
          %v1431 = vsel %vm1186, %v1426, -inf
          %1432 = vmax.xlane.f32.xlu0 %v1431
          %v1433 = vpop.xlane.xlu0 %1432
          %v1434 = vsub.f32 %v1426, %v1433
          %v1435 = vmul.f32 %v1434, 1.442695
          %v1436 = vpow.pop %v1435
          %v1437 = vsel %vm1186, %v1436, 0.0
          %1438 = vadd.xlane.f32.xlu0 %v1437
          %v1439 = vpop.xlane.xlu0 %1438
          %v1440 = vrcp.pop %v1439
          %v1441 = vmul.f32 %v1436, %v1440
          %v1442 = vpack.c.bf16 %v1441, %v1441
          %1444 = vrot.lane.b32.xlu0 %v1378, 64
          %v1445 = vpop.permute.xlu0 %1444
          %v1447 = vsel %vm1186, %v1442, 0
          %v1450 = vsel %vm1202, %v1445, 0
          %1452 = vmatprep.subr.bf16.mxu0 0
          %1453 = vmatpush1.bf16.msra.mxu0 0
          %1454 = vmatprep.subr.bf16.mxu0 0
          %1455 = vmatpush1.bf16.msra.mxu0 0
          %1456 = vmatprep.subr.bf16.mxu0 0
          %1457 = vmatpush1.bf16.msra.mxu0 0
          %1458 = vmatprep.subr.bf16.mxu0 0
          %1459 = vmatpush1.bf16.msra.mxu0 0
          %1460 = vmatprep.subr.bf16.mxu0 0
          %1461 = vmatpush1.bf16.msra.mxu0 0
          %1462 = vmatprep.subr.bf16.mxu0 0
          %1463 = vmatpush1.bf16.msra.mxu0 0
          %1464 = vmatprep.subr.bf16.mxu0 0
          %1465 = vmatpush1.bf16.msra.mxu0 0
          %1466 = vmatprep.subr.bf16.mxu0 0
          %1467 = vmatpush1.bf16.msra.mxu0 %v1450
          %1468 = vmatprep.subr.bf16.mxu0 0
          %1469 = vmatpush2.bf16.msra.mxu0 0
          %1470 = vmatprep.subr.bf16.mxu0 0
          %1471 = vmatpush2.bf16.msra.mxu0 0
          %1472 = vmatprep.subr.bf16.mxu0 0
          %1473 = vmatpush2.bf16.msra.mxu0 0
          %1474 = vmatprep.subr.bf16.mxu0 0
          %1475 = vmatpush2.bf16.msra.mxu0 0
          %1476 = vmatprep.subr.bf16.mxu0 0
          %1477 = vmatpush2.bf16.msra.mxu0 0
          %1478 = vmatprep.subr.bf16.mxu0 0
          %1479 = vmatpush2.bf16.msra.mxu0 0
          %1480 = vmatprep.subr.bf16.mxu0 0
          %1481 = vmatpush2.bf16.msra.mxu0 0
          %1482 = vmatprep.subr.bf16.mxu0 0
          %1483 = vmatpush2.bf16.msra.mxu0 0
          %1484 = vmatprep.mubr.bf16.mxu0 0
          %1485 = vmatmul.mubr.bf16.gmra.mxu0 %v1447
          %v1486 = vpop.f32.mrf.mxu0
          %v1487 = vadd.f32 0.0, %v1486
          %v1488 = vpop.f32.mrf.mxu0
          %v1489 = vpop.f32.mrf.mxu0
          %v1490 = vpop.f32.mrf.mxu0
          %1491 = vdwg.mxu0
          %1493 = vrot.lane.b32.xlu0 %v1487, 64
          %v1494 = vpop.permute.xlu0 %1493
          %vm1496 = vcmask 785920
          %1497 = vst.msk [vmem:[%s1246] sm:$0xff] %vm1496, %v1494
          %v1498 = vld [vmem:[%s1132] sm:$0xff]
          %v1499 = vpack.c.bf16 %v1498, %v1498
          %v1500 = vld [vmem:[%s1132 + $0x8] sm:$0xff]
          %v1501 = vpack.c.bf16 %v1500, %v1500
          %v1502 = vld [vmem:[%s1132 + $0x10] sm:$0xff]
          %v1503 = vpack.c.bf16 %v1502, %v1502
          %1505 = vrot.lane.b32.xlu0 %v1499, 32
          %v1506 = vpop.permute.xlu0 %1505
          %1508 = vrot.lane.b32.xlu0 %v1501, 32
          %v1509 = vpop.permute.xlu0 %1508
          %v1511 = vsel %vm1139, %v1506, 0
          %v1514 = vsel %vm1139, %v1509, 0
          %1516 = vmatprep.subr.bf16.mxu0 0
          %1517 = vmatpush1.bf16.xpose.msra.mxu0 0
          %1518 = vmatprep.subr.bf16.mxu0 0
          %1519 = vmatpush1.bf16.xpose.msra.mxu0 0
          %1520 = vmatprep.subr.bf16.mxu0 0
          %1521 = vmatpush1.bf16.xpose.msra.mxu0 0
          %1522 = vmatprep.subr.bf16.mxu0 0
          %1523 = vmatpush1.bf16.xpose.msra.mxu0 0
          %1524 = vmatprep.subr.bf16.mxu0 0
          %1525 = vmatpush1.bf16.xpose.msra.mxu0 0
          %1526 = vmatprep.subr.bf16.mxu0 0
          %1527 = vmatpush1.bf16.xpose.msra.mxu0 0
          %1528 = vmatprep.subr.bf16.mxu0 0
          %1529 = vmatpush1.bf16.xpose.msra.mxu0 0
          %1530 = vmatprep.subr.bf16.mxu0 0
          %1531 = vmatpush1.bf16.xpose.msra.mxu0 %v1514
          %1532 = vmatprep.subr.bf16.mxu0 0
          %1533 = vmatpush2.bf16.xpose.msra.mxu0 0
          %1534 = vmatprep.subr.bf16.mxu0 0
          %1535 = vmatpush2.bf16.xpose.msra.mxu0 0
          %1536 = vmatprep.subr.bf16.mxu0 0
          %1537 = vmatpush2.bf16.xpose.msra.mxu0 0
          %1538 = vmatprep.subr.bf16.mxu0 0
          %1539 = vmatpush2.bf16.xpose.msra.mxu0 0
          %1540 = vmatprep.subr.bf16.mxu0 0
          %1541 = vmatpush2.bf16.xpose.msra.mxu0 0
          %1542 = vmatprep.subr.bf16.mxu0 0
          %1543 = vmatpush2.bf16.xpose.msra.mxu0 0
          %1544 = vmatprep.subr.bf16.mxu0 0
          %1545 = vmatpush2.bf16.xpose.msra.mxu0 0
          %1546 = vmatprep.subr.bf16.mxu0 0
          %1547 = vmatpush2.bf16.xpose.msra.mxu0 0
          %1548 = vmatprep.mubr.bf16.mxu0 0
          %1549 = vmatmul.mubr.bf16.gmra.mxu0 %v1511
          %v1550 = vpop.f32.mrf.mxu0
          %v1551 = vadd.f32 0.0, %v1550
          %v1552 = vpop.f32.mrf.mxu0
          %v1553 = vpop.f32.mrf.mxu0
          %v1554 = vpop.f32.mrf.mxu0
          %1555 = vdwg.mxu0
          %v1556 = vsel %vm1186, %v1551, -inf
          %1557 = vmax.xlane.f32.xlu0 %v1556
          %v1558 = vpop.xlane.xlu0 %1557
          %v1559 = vsub.f32 %v1551, %v1558
          %v1560 = vmul.f32 %v1559, 1.442695
          %v1561 = vpow.pop %v1560
          %v1562 = vsel %vm1186, %v1561, 0.0
          %1563 = vadd.xlane.f32.xlu0 %v1562
          %v1564 = vpop.xlane.xlu0 %1563
          %v1565 = vrcp.pop %v1564
          %v1566 = vmul.f32 %v1561, %v1565
          %v1567 = vpack.c.bf16 %v1566, %v1566
          %1569 = vrot.lane.b32.xlu0 %v1503, 32
          %v1570 = vpop.permute.xlu0 %1569
          %v1572 = vsel %vm1186, %v1567, 0
          %v1575 = vsel %vm1202, %v1570, 0
          %1577 = vmatprep.subr.bf16.mxu0 0
          %1578 = vmatpush1.bf16.msra.mxu0 0
          %1579 = vmatprep.subr.bf16.mxu0 0
          %1580 = vmatpush1.bf16.msra.mxu0 0
          %1581 = vmatprep.subr.bf16.mxu0 0
          %1582 = vmatpush1.bf16.msra.mxu0 0
          %1583 = vmatprep.subr.bf16.mxu0 0
          %1584 = vmatpush1.bf16.msra.mxu0 0
          %1585 = vmatprep.subr.bf16.mxu0 0
          %1586 = vmatpush1.bf16.msra.mxu0 0
          %1587 = vmatprep.subr.bf16.mxu0 0
          %1588 = vmatpush1.bf16.msra.mxu0 0
          %1589 = vmatprep.subr.bf16.mxu0 0
          %1590 = vmatpush1.bf16.msra.mxu0 0
          %1591 = vmatprep.subr.bf16.mxu0 0
          %1592 = vmatpush1.bf16.msra.mxu0 %v1575
          %1593 = vmatprep.subr.bf16.mxu0 0
          %1594 = vmatpush2.bf16.msra.mxu0 0
          %1595 = vmatprep.subr.bf16.mxu0 0
          %1596 = vmatpush2.bf16.msra.mxu0 0
          %1597 = vmatprep.subr.bf16.mxu0 0
          %1598 = vmatpush2.bf16.msra.mxu0 0
          %1599 = vmatprep.subr.bf16.mxu0 0
          %1600 = vmatpush2.bf16.msra.mxu0 0
          %1601 = vmatprep.subr.bf16.mxu0 0
          %1602 = vmatpush2.bf16.msra.mxu0 0
          %1603 = vmatprep.subr.bf16.mxu0 0
          %1604 = vmatpush2.bf16.msra.mxu0 0
          %1605 = vmatprep.subr.bf16.mxu0 0
          %1606 = vmatpush2.bf16.msra.mxu0 0
          %1607 = vmatprep.subr.bf16.mxu0 0
          %1608 = vmatpush2.bf16.msra.mxu0 0
          %1609 = vmatprep.mubr.bf16.mxu0 0
          %1610 = vmatmul.mubr.bf16.gmra.mxu0 %v1572
          %v1611 = vpop.f32.mrf.mxu0
          %v1612 = vadd.f32 0.0, %v1611
          %v1613 = vpop.f32.mrf.mxu0
          %v1614 = vpop.f32.mrf.mxu0
          %v1615 = vpop.f32.mrf.mxu0
          %1616 = vdwg.mxu0
          %1618 = vrot.lane.b32.xlu0 %v1612, 96
          %v1619 = vpop.permute.xlu0 %1618
          %vm1621 = vcmask 1048320
          %1622 = vst.msk [vmem:[%s1246] sm:$0xff] %vm1621, %v1619
        $region126: #{tpu_custom_call.1} parent=87 // loop_footer
          %s1126 = sadd.s32 1, %s1122
        $region127: #{tpu_custom_call.1} parent=87 // loop_footer_branch
          %1121 = sbr.rel target = $region123
        $region128: #{tpu_custom_call.1} parent=87 // loop_exit
          _
        %v1623 = vld [vmem:[#allocation4] sm:$0xff]
        %v1624 = vld [vmem:[#allocation4 + $0x8] sm:$0xff]
        %v1625 = vpack.c.bf16 %v1624, %v1623
        %v1626 = vld [vmem:[%s683] sm:$0xf]
        %v1627 = vld [vmem:[%s683 + $0x4] sm:$0xf]
        %v1628 = vld [vmem:[%s683 + $0x8] sm:$0xf]
        %v1629 = vld [vmem:[%s683 + $0xc] sm:$0xf]
        %v1630 = vld [vmem:[%s683 + $0x10] sm:$0xf]
        %v1631 = vld [vmem:[%s683 + $0x14] sm:$0xf]
        %v1632 = vld [vmem:[%s683 + $0x18] sm:$0xf]
        %v1633 = vld [vmem:[%s683 + $0x1c] sm:$0xf]
        %v1634 = vld [vmem:[%s683 + $0x20] sm:$0xf]
        %v1635 = vld [vmem:[%s683 + $0x24] sm:$0xf]
        %v1636 = vld [vmem:[%s683 + $0x28] sm:$0xf]
        %v1637 = vld [vmem:[%s683 + $0x2c] sm:$0xf]
        %v1638 = vld [vmem:[%s683 + $0x30] sm:$0xf]
        %v1639 = vld [vmem:[%s683 + $0x34] sm:$0xf]
        %v1640 = vld [vmem:[%s683 + $0x38] sm:$0xf]
        %v1641 = vld [vmem:[%s683 + $0x3c] sm:$0xf]
        %v1642 = vld [vmem:[%s794] sm:$0x1]
        %v1644 = vlaneseq
        %v1645 = vshrl.u32 %v1644, 7
        %v1646 = vsub.s32 0, %v1645
        %v1647 = vrot.slane %v1642, %v1646
        %v1665 = vunpack.c.l.b16 %v1626
        %v1666 = vunpack.c.l.b16 %v1627
        %v1667 = vunpack.c.l.b16 %v1628
        %v1668 = vunpack.c.l.b16 %v1629
        %v1669 = vunpack.c.l.b16 %v1630
        %v1670 = vunpack.c.l.b16 %v1631
        %v1671 = vunpack.c.l.b16 %v1632
        %v1672 = vunpack.c.l.b16 %v1633
        %v1673 = vunpack.c.l.b16 %v1634
        %v1674 = vunpack.c.l.b16 %v1635
        %v1675 = vunpack.c.l.b16 %v1636
        %v1676 = vunpack.c.l.b16 %v1637
        %v1677 = vunpack.c.l.b16 %v1638
        %v1678 = vunpack.c.l.b16 %v1639
        %v1679 = vunpack.c.l.b16 %v1640
        %v1680 = vunpack.c.l.b16 %v1641
        %v1681 = vpack.c.b16 %v1666, %v1665
        %v1682 = vpack.c.b16 %v1668, %v1667
        %v1683 = vpack.c.b16 %v1670, %v1669
        %v1684 = vpack.c.b16 %v1672, %v1671
        %v1685 = vpack.c.b16 %v1674, %v1673
        %v1686 = vpack.c.b16 %v1676, %v1675
        %v1687 = vpack.c.b16 %v1678, %v1677
        %v1688 = vpack.c.b16 %v1680, %v1679
        %1697 = vmatprep.subr.bf16.mxu0 0
        %1698 = vmatpush1.bf16.msra.mxu0 %v1688
        %1699 = vmatprep.subr.bf16.mxu0 0
        %1700 = vmatpush1.bf16.msra.mxu0 %v1687
        %1701 = vmatprep.subr.bf16.mxu0 0
        %1702 = vmatpush1.bf16.msra.mxu0 %v1686
        %1703 = vmatprep.subr.bf16.mxu0 0
        %1704 = vmatpush1.bf16.msra.mxu0 %v1685
        %1705 = vmatprep.subr.bf16.mxu0 0
        %1706 = vmatpush1.bf16.msra.mxu0 %v1684
        %1707 = vmatprep.subr.bf16.mxu0 0
        %1708 = vmatpush1.bf16.msra.mxu0 %v1683
        %1709 = vmatprep.subr.bf16.mxu0 0
        %1710 = vmatpush1.bf16.msra.mxu0 %v1682
        %1711 = vmatprep.subr.bf16.mxu0 0
        %1712 = vmatpush1.bf16.msra.mxu0 %v1681
        %1713 = vmatprep.subr.bf16.mxu0 0
        %1714 = vmatpush2.bf16.msra.mxu0 0
        %1715 = vmatprep.subr.bf16.mxu0 0
        %1716 = vmatpush2.bf16.msra.mxu0 0
        %1717 = vmatprep.subr.bf16.mxu0 0
        %1718 = vmatpush2.bf16.msra.mxu0 0
        %1719 = vmatprep.subr.bf16.mxu0 0
        %1720 = vmatpush2.bf16.msra.mxu0 0
        %1721 = vmatprep.subr.bf16.mxu0 0
        %1722 = vmatpush2.bf16.msra.mxu0 0
        %1723 = vmatprep.subr.bf16.mxu0 0
        %1724 = vmatpush2.bf16.msra.mxu0 0
        %1725 = vmatprep.subr.bf16.mxu0 0
        %1726 = vmatpush2.bf16.msra.mxu0 0
        %1727 = vmatprep.subr.bf16.mxu0 0
        %1728 = vmatpush2.bf16.msra.mxu0 0
        %1729 = vmatprep.mubr.bf16.mxu0 0
        %1730 = vmatmul.mubr.bf16.gmra.mxu0 %v1625
        %v1731 = vpop.f32.mrf.mxu0
        %v1732 = vadd.f32 %v1647, %v1731
        %v1733 = vpop.f32.mrf.mxu0
        %v1734 = vpop.f32.mrf.mxu0
        %v1735 = vadd.f32 %v1647, %v1734
        %v1736 = vpop.f32.mrf.mxu0
        %1737 = vdwg.mxu0
        %v1738 = vadd.f32 %v827, %v1732
        %v1739 = vadd.f32 %v828, %v1735
        %v1740 = vld [vmem:[%s801] sm:$0x1]
        %v1741 = vld [vmem:[%s804] sm:$0x1]
        %1742 = vadd.xlane.f32.xlu0 %v1738
        %v1743 = vpop.xlane.xlu0 %1742
        %1744 = vadd.xlane.f32.xlu0 %v1739
        %v1745 = vpop.xlane.xlu0 %1744
        %v1746 = vmul.f32 %v1743, %v835
        %v1747 = vmul.f32 %v1745, %v835
        %v1748 = vsub.f32 %v1738, %v1746
        %v1749 = vsub.f32 %v1739, %v1747
        %v1750 = vmul.f32 %v1748, %v1748
        %v1751 = vmul.f32 %v1749, %v1749
        %1752 = vadd.xlane.f32.xlu0 %v1750
        %v1753 = vpop.xlane.xlu0 %1752
        %1754 = vadd.xlane.f32.xlu0 %v1751
        %v1755 = vpop.xlane.xlu0 %1754
        %v1756 = vmul.f32 %v1753, %v835
        %v1757 = vmul.f32 %v1755, %v835
        %v1758 = vadd.f32 %v1756, 1e-05
        %v1759 = vadd.f32 %v1757, 1e-05
        %v1760 = vrsqrt.pop %v1758
        %v1761 = vrsqrt.pop %v1759
        %v1762 = vmul.f32 %v1748, %v1760
        %v1763 = vmul.f32 %v1749, %v1761
        %v1765 = vlaneseq
        %v1766 = vshrl.u32 %v1765, 7
        %v1767 = vsub.s32 0, %v1766
        %v1768 = vrot.slane %v1740, %v1767
        %v1770 = vmul.f32 %v1762, %v1768
        %v1771 = vmul.f32 %v1763, %v1768
        %v1773 = vlaneseq
        %v1774 = vshrl.u32 %v1773, 7
        %v1775 = vsub.s32 0, %v1774
        %v1776 = vrot.slane %v1741, %v1775
        %v1778 = vadd.f32 %v1770, %v1776
        %v1779 = vadd.f32 %v1771, %v1776
        %v1780 = vpack.c.bf16 %v1779, %v1778
        %v1781 = vld [vmem:[%s692] sm:$0xff]
        %v1782 = vld [vmem:[%s692 + $0x8] sm:$0xff]
        %v1783 = vld [vmem:[%s692 + $0x10] sm:$0xff]
        %v1784 = vld [vmem:[%s692 + $0x18] sm:$0xff]
        %v1785 = vld [vmem:[%s692 + $0x20] sm:$0xff]
        %v1786 = vld [vmem:[%s692 + $0x28] sm:$0xff]
        %v1787 = vld [vmem:[%s692 + $0x30] sm:$0xff]
        %v1788 = vld [vmem:[%s692 + $0x38] sm:$0xff]
        %v1789 = vld [vmem:[%s692 + $0x40] sm:$0xff]
        %v1790 = vld [vmem:[%s692 + $0x48] sm:$0xff]
        %v1791 = vld [vmem:[%s692 + $0x50] sm:$0xff]
        %v1792 = vld [vmem:[%s692 + $0x58] sm:$0xff]
        %v1793 = vld [vmem:[%s692 + $0x60] sm:$0xff]
        %v1794 = vld [vmem:[%s692 + $0x68] sm:$0xff]
        %v1795 = vld [vmem:[%s692 + $0x70] sm:$0xff]
        %v1796 = vld [vmem:[%s692 + $0x78] sm:$0xff]
        %v1797 = vld [vmem:[%s798] sm:$0x3]
        %v1799 = vlaneseq
        %v1800 = vshrl.u32 %v1799, 7
        %v1801 = vsub.s32 0, %v1800
        %v1802 = vrot.slane %v1797, %v1801
        %v1803 = vlaneseq
        %v1804 = vshrl.u32 %v1803, 7
        %v1805 = vsub.s32 1, %v1804
        %v1806 = vrot.slane %v1797, %v1805
        %v1825 = vunpack.c.l.b16 %v1781
        %v1826 = vunpack.c.h.b16 %v1781
        %v1827 = vunpack.c.l.b16 %v1782
        %v1828 = vunpack.c.h.b16 %v1782
        %v1829 = vunpack.c.l.b16 %v1783
        %v1830 = vunpack.c.h.b16 %v1783
        %v1831 = vunpack.c.l.b16 %v1784
        %v1832 = vunpack.c.h.b16 %v1784
        %v1833 = vunpack.c.l.b16 %v1785
        %v1834 = vunpack.c.h.b16 %v1785
        %v1835 = vunpack.c.l.b16 %v1786
        %v1836 = vunpack.c.h.b16 %v1786
        %v1837 = vunpack.c.l.b16 %v1787
        %v1838 = vunpack.c.h.b16 %v1787
        %v1839 = vunpack.c.l.b16 %v1788
        %v1840 = vunpack.c.h.b16 %v1788
        %v1841 = vunpack.c.l.b16 %v1789
        %v1842 = vunpack.c.h.b16 %v1789
        %v1843 = vunpack.c.l.b16 %v1790
        %v1844 = vunpack.c.h.b16 %v1790
        %v1845 = vunpack.c.l.b16 %v1791
        %v1846 = vunpack.c.h.b16 %v1791
        %v1847 = vunpack.c.l.b16 %v1792
        %v1848 = vunpack.c.h.b16 %v1792
        %v1849 = vunpack.c.l.b16 %v1793
        %v1850 = vunpack.c.h.b16 %v1793
        %v1851 = vunpack.c.l.b16 %v1794
        %v1852 = vunpack.c.h.b16 %v1794
        %v1853 = vunpack.c.l.b16 %v1795
        %v1854 = vunpack.c.h.b16 %v1795
        %v1855 = vunpack.c.l.b16 %v1796
        %v1856 = vunpack.c.h.b16 %v1796
        %v1857 = vpack.c.b16 %v1827, %v1825
        %v1858 = vpack.c.b16 %v1828, %v1826
        %v1859 = vpack.c.b16 %v1831, %v1829
        %v1860 = vpack.c.b16 %v1832, %v1830
        %v1861 = vpack.c.b16 %v1835, %v1833
        %v1862 = vpack.c.b16 %v1836, %v1834
        %v1863 = vpack.c.b16 %v1839, %v1837
        %v1864 = vpack.c.b16 %v1840, %v1838
        %v1865 = vpack.c.b16 %v1843, %v1841
        %v1866 = vpack.c.b16 %v1844, %v1842
        %v1867 = vpack.c.b16 %v1847, %v1845
        %v1868 = vpack.c.b16 %v1848, %v1846
        %v1869 = vpack.c.b16 %v1851, %v1849
        %v1870 = vpack.c.b16 %v1852, %v1850
        %v1871 = vpack.c.b16 %v1855, %v1853
        %v1872 = vpack.c.b16 %v1856, %v1854
        %1889 = vmatprep.subr.bf16.mxu0 %v1872
        %1890 = vmatpush1.bf16.msra.mxu0 %v1871
        %1891 = vmatprep.subr.bf16.mxu0 %v1870
        %1892 = vmatpush1.bf16.msra.mxu0 %v1869
        %1893 = vmatprep.subr.bf16.mxu0 %v1868
        %1894 = vmatpush1.bf16.msra.mxu0 %v1867
        %1895 = vmatprep.subr.bf16.mxu0 %v1866
        %1896 = vmatpush1.bf16.msra.mxu0 %v1865
        %1897 = vmatprep.subr.bf16.mxu0 %v1864
        %1898 = vmatpush1.bf16.msra.mxu0 %v1863
        %1899 = vmatprep.subr.bf16.mxu0 %v1862
        %1900 = vmatpush1.bf16.msra.mxu0 %v1861
        %1901 = vmatprep.subr.bf16.mxu0 %v1860
        %1902 = vmatpush1.bf16.msra.mxu0 %v1859
        %1903 = vmatprep.subr.bf16.mxu0 %v1858
        %1904 = vmatpush1.bf16.msra.mxu0 %v1857
        %1905 = vmatprep.subr.bf16.mxu0 0
        %1906 = vmatpush2.bf16.msra.mxu0 0
        %1907 = vmatprep.subr.bf16.mxu0 0
        %1908 = vmatpush2.bf16.msra.mxu0 0
        %1909 = vmatprep.subr.bf16.mxu0 0
        %1910 = vmatpush2.bf16.msra.mxu0 0
        %1911 = vmatprep.subr.bf16.mxu0 0
        %1912 = vmatpush2.bf16.msra.mxu0 0
        %1913 = vmatprep.subr.bf16.mxu0 0
        %1914 = vmatpush2.bf16.msra.mxu0 0
        %1915 = vmatprep.subr.bf16.mxu0 0
        %1916 = vmatpush2.bf16.msra.mxu0 0
        %1917 = vmatprep.subr.bf16.mxu0 0
        %1918 = vmatpush2.bf16.msra.mxu0 0
        %1919 = vmatprep.subr.bf16.mxu0 0
        %1920 = vmatpush2.bf16.msra.mxu0 0
        %1921 = vmatprep.mubr.bf16.mxu0 0
        %1922 = vmatmul.mubr.bf16.gmra.mxu0 %v1780
        %v1923 = vpop.f32.mrf.mxu0
        %v1924 = vadd.f32 %v1802, %v1923
        %v1925 = vpop.f32.mrf.mxu0
        %v1926 = vadd.f32 %v1806, %v1925
        %v1927 = vpop.f32.mrf.mxu0
        %v1928 = vadd.f32 %v1802, %v1927
        %v1929 = vpop.f32.mrf.mxu0
        %v1930 = vadd.f32 %v1806, %v1929
        %1931 = vdwg.mxu0
        %v1932 = vmax.f32 %v1924, 0.0
        %v1933 = vmax.f32 %v1926, 0.0
        %v1934 = vmax.f32 %v1928, 0.0
        %v1935 = vmax.f32 %v1930, 0.0
        %v1936 = vpack.c.bf16 %v1934, %v1932
        %v1937 = vpack.c.bf16 %v1935, %v1933
        %v1938 = vld [vmem:[%s701] sm:$0xf]
        %v1939 = vld [vmem:[%s701 + $0x4] sm:$0xf]
        %v1940 = vld [vmem:[%s701 + $0x8] sm:$0xf]
        %v1941 = vld [vmem:[%s701 + $0xc] sm:$0xf]
        %v1942 = vld [vmem:[%s701 + $0x10] sm:$0xf]
        %v1943 = vld [vmem:[%s701 + $0x14] sm:$0xf]
        %v1944 = vld [vmem:[%s701 + $0x18] sm:$0xf]
        %v1945 = vld [vmem:[%s701 + $0x1c] sm:$0xf]
        %v1946 = vld [vmem:[%s701 + $0x20] sm:$0xf]
        %v1947 = vld [vmem:[%s701 + $0x24] sm:$0xf]
        %v1948 = vld [vmem:[%s701 + $0x28] sm:$0xf]
        %v1949 = vld [vmem:[%s701 + $0x2c] sm:$0xf]
        %v1950 = vld [vmem:[%s701 + $0x30] sm:$0xf]
        %v1951 = vld [vmem:[%s701 + $0x34] sm:$0xf]
        %v1952 = vld [vmem:[%s701 + $0x38] sm:$0xf]
        %v1953 = vld [vmem:[%s701 + $0x3c] sm:$0xf]
        %v1954 = vld [vmem:[%s701 + $0x40] sm:$0xf]
        %v1955 = vld [vmem:[%s701 + $0x44] sm:$0xf]
        %v1956 = vld [vmem:[%s701 + $0x48] sm:$0xf]
        %v1957 = vld [vmem:[%s701 + $0x4c] sm:$0xf]
        %v1958 = vld [vmem:[%s701 + $0x50] sm:$0xf]
        %v1959 = vld [vmem:[%s701 + $0x54] sm:$0xf]
        %v1960 = vld [vmem:[%s701 + $0x58] sm:$0xf]
        %v1961 = vld [vmem:[%s701 + $0x5c] sm:$0xf]
        %v1962 = vld [vmem:[%s701 + $0x60] sm:$0xf]
        %v1963 = vld [vmem:[%s701 + $0x64] sm:$0xf]
        %v1964 = vld [vmem:[%s701 + $0x68] sm:$0xf]
        %v1965 = vld [vmem:[%s701 + $0x6c] sm:$0xf]
        %v1966 = vld [vmem:[%s701 + $0x70] sm:$0xf]
        %v1967 = vld [vmem:[%s701 + $0x74] sm:$0xf]
        %v1968 = vld [vmem:[%s701 + $0x78] sm:$0xf]
        %v1969 = vld [vmem:[%s701 + $0x7c] sm:$0xf]
        %v1970 = vld [vmem:[%s807] sm:$0x1]
        %v1972 = vlaneseq
        %v1973 = vshrl.u32 %v1972, 7
        %v1974 = vsub.s32 0, %v1973
        %v1975 = vrot.slane %v1970, %v1974
        %v2009 = vunpack.c.l.b16 %v1938
        %v2010 = vunpack.c.l.b16 %v1939
        %v2011 = vunpack.c.l.b16 %v1940
        %v2012 = vunpack.c.l.b16 %v1941
        %v2013 = vunpack.c.l.b16 %v1942
        %v2014 = vunpack.c.l.b16 %v1943
        %v2015 = vunpack.c.l.b16 %v1944
        %v2016 = vunpack.c.l.b16 %v1945
        %v2017 = vunpack.c.l.b16 %v1946
        %v2018 = vunpack.c.l.b16 %v1947
        %v2019 = vunpack.c.l.b16 %v1948
        %v2020 = vunpack.c.l.b16 %v1949
        %v2021 = vunpack.c.l.b16 %v1950
        %v2022 = vunpack.c.l.b16 %v1951
        %v2023 = vunpack.c.l.b16 %v1952
        %v2024 = vunpack.c.l.b16 %v1953
        %v2025 = vunpack.c.l.b16 %v1954
        %v2026 = vunpack.c.l.b16 %v1955
        %v2027 = vunpack.c.l.b16 %v1956
        %v2028 = vunpack.c.l.b16 %v1957
        %v2029 = vunpack.c.l.b16 %v1958
        %v2030 = vunpack.c.l.b16 %v1959
        %v2031 = vunpack.c.l.b16 %v1960
        %v2032 = vunpack.c.l.b16 %v1961
        %v2033 = vunpack.c.l.b16 %v1962
        %v2034 = vunpack.c.l.b16 %v1963
        %v2035 = vunpack.c.l.b16 %v1964
        %v2036 = vunpack.c.l.b16 %v1965
        %v2037 = vunpack.c.l.b16 %v1966
        %v2038 = vunpack.c.l.b16 %v1967
        %v2039 = vunpack.c.l.b16 %v1968
        %v2040 = vunpack.c.l.b16 %v1969
        %v2041 = vpack.c.b16 %v2010, %v2009
        %v2042 = vpack.c.b16 %v2012, %v2011
        %v2043 = vpack.c.b16 %v2014, %v2013
        %v2044 = vpack.c.b16 %v2016, %v2015
        %v2045 = vpack.c.b16 %v2018, %v2017
        %v2046 = vpack.c.b16 %v2020, %v2019
        %v2047 = vpack.c.b16 %v2022, %v2021
        %v2048 = vpack.c.b16 %v2024, %v2023
        %v2049 = vpack.c.b16 %v2026, %v2025
        %v2050 = vpack.c.b16 %v2028, %v2027
        %v2051 = vpack.c.b16 %v2030, %v2029
        %v2052 = vpack.c.b16 %v2032, %v2031
        %v2053 = vpack.c.b16 %v2034, %v2033
        %v2054 = vpack.c.b16 %v2036, %v2035
        %v2055 = vpack.c.b16 %v2038, %v2037
        %v2056 = vpack.c.b16 %v2040, %v2039
        %2073 = vmatprep.subr.bf16.mxu0 0
        %2074 = vmatpush1.bf16.msra.mxu0 %v2048
        %2075 = vmatprep.subr.bf16.mxu0 0
        %2076 = vmatpush1.bf16.msra.mxu0 %v2047
        %2077 = vmatprep.subr.bf16.mxu0 0
        %2078 = vmatpush1.bf16.msra.mxu0 %v2046
        %2079 = vmatprep.subr.bf16.mxu0 0
        %2080 = vmatpush1.bf16.msra.mxu0 %v2045
        %2081 = vmatprep.subr.bf16.mxu0 0
        %2082 = vmatpush1.bf16.msra.mxu0 %v2044
        %2083 = vmatprep.subr.bf16.mxu0 0
        %2084 = vmatpush1.bf16.msra.mxu0 %v2043
        %2085 = vmatprep.subr.bf16.mxu0 0
        %2086 = vmatpush1.bf16.msra.mxu0 %v2042
        %2087 = vmatprep.subr.bf16.mxu0 0
        %2088 = vmatpush1.bf16.msra.mxu0 %v2041
        %2089 = vmatprep.subr.bf16.mxu0 0
        %2090 = vmatpush2.bf16.msra.mxu0 %v2056
        %2091 = vmatprep.subr.bf16.mxu0 0
        %2092 = vmatpush2.bf16.msra.mxu0 %v2055
        %2093 = vmatprep.subr.bf16.mxu0 0
        %2094 = vmatpush2.bf16.msra.mxu0 %v2054
        %2095 = vmatprep.subr.bf16.mxu0 0
        %2096 = vmatpush2.bf16.msra.mxu0 %v2053
        %2097 = vmatprep.subr.bf16.mxu0 0
        %2098 = vmatpush2.bf16.msra.mxu0 %v2052
        %2099 = vmatprep.subr.bf16.mxu0 0
        %2100 = vmatpush2.bf16.msra.mxu0 %v2051
        %2101 = vmatprep.subr.bf16.mxu0 0
        %2102 = vmatpush2.bf16.msra.mxu0 %v2050
        %2103 = vmatprep.subr.bf16.mxu0 0
        %2104 = vmatpush2.bf16.msra.mxu0 %v2049
        %2105 = vmatprep.mubr.bf16.mxu0 %v1937
        %2106 = vmatmul.mubr.bf16.gmra.mxu0 %v1936
        %v2107 = vpop.f32.mrf.mxu0
        %v2108 = vadd.f32 %v1975, %v2107
        %v2109 = vpop.f32.mrf.mxu0
        %v2110 = vpop.f32.mrf.mxu0
        %v2111 = vadd.f32 %v1975, %v2110
        %v2112 = vpop.f32.mrf.mxu0
        %2113 = vdwg.mxu0
        %v2114 = vadd.f32 %v1778, %v2108
        %v2115 = vadd.f32 %v1779, %v2111
        %v2116 = vadd.f32 %v827, %v2114
        %v2117 = vadd.f32 %v828, %v2115
        %2118 = vst [vmem:[#allocation2] sm:$0xff] %v2116
        %2119 = vst [vmem:[#allocation2 + $0x8] sm:$0xff] %v2117
        %p2120 = scmp.eq.s32.totalorder %s42, 1
        // Predicated region
        $region129: #{tpu_custom_call.1} parent=87 // pred_check
          %p2121 = pneg %p2120
        $region130: #{tpu_custom_call.1} parent=87 // pred_check_branch
          %2123 = sbr.rel (%p2121) target = $region132
        $region131: #{tpu_custom_call.1} parent=87 // pred_region
          %v2124 = vld [vmem:[#allocation2] sm:$0xff]
          %v2125 = vld [vmem:[#allocation2 + $0x8] sm:$0xff]
          %v2126 = vld [vmem:[%s12] sm:$0x1]
          %v2127 = vld [vmem:[%s13] sm:$0x1]
          %2128 = vadd.xlane.f32.xlu0 %v2124
          %v2129 = vpop.xlane.xlu0 %2128
          %2130 = vadd.xlane.f32.xlu0 %v2125
          %v2131 = vpop.xlane.xlu0 %2130
          %v2132 = vmul.f32 %v2129, %v835
          %v2133 = vmul.f32 %v2131, %v835
          %v2134 = vsub.f32 %v2124, %v2132
          %v2135 = vsub.f32 %v2125, %v2133
          %v2136 = vmul.f32 %v2134, %v2134
          %v2137 = vmul.f32 %v2135, %v2135
          %2138 = vadd.xlane.f32.xlu0 %v2136
          %v2139 = vpop.xlane.xlu0 %2138
          %2140 = vadd.xlane.f32.xlu0 %v2137
          %v2141 = vpop.xlane.xlu0 %2140
          %v2142 = vmul.f32 %v2139, %v835
          %v2143 = vmul.f32 %v2141, %v835
          %v2144 = vadd.f32 %v2142, 1e-05
          %v2145 = vadd.f32 %v2143, 1e-05
          %v2146 = vrsqrt.pop %v2144
          %v2147 = vrsqrt.pop %v2145
          %v2148 = vmul.f32 %v2134, %v2146
          %v2149 = vmul.f32 %v2135, %v2147
          %v2151 = vlaneseq
          %v2152 = vshrl.u32 %v2151, 7
          %v2153 = vsub.s32 0, %v2152
          %v2154 = vrot.slane %v2126, %v2153
          %v2156 = vmul.f32 %v2148, %v2154
          %v2157 = vmul.f32 %v2149, %v2154
          %v2159 = vlaneseq
          %v2160 = vshrl.u32 %v2159, 7
          %v2161 = vsub.s32 0, %v2160
          %v2162 = vrot.slane %v2127, %v2161
          %v2164 = vadd.f32 %v2156, %v2162
          %v2165 = vadd.f32 %v2157, %v2162
          %v2166 = vld [vmem:[%s14] sm:$0x1]
          %v2168 = vlaneseq
          %v2169 = vshrl.u32 %v2168, 7
          %v2170 = vsub.s32 0, %v2169
          %v2171 = vrot.slane %v2166, %v2170
          %v2173 = vmul.f32 %v2164, %v2171
          %v2174 = vmul.f32 %v2165, %v2171
          %2175 = vadd.xlane.f32.xlu0 %v2173
          %v2176 = vpop.xlane.xlu0 %2175
          %2177 = vadd.xlane.f32.xlu0 %v2174
          %v2178 = vpop.xlane.xlu0 %2177
          %v2179 = vld [vmem:[#allocation5] sm:$0x1]
          %v2181 = vlaneseq
          %v2182 = vshrl.u32 %v2181, 7
          %v2183 = vsub.s32 0, %v2182
          %v2184 = vrot.slane %v2179, %v2183
          %v2186 = vadd.f32 %v2176, %v2184
          %v2187 = vadd.f32 %v2178, %v2184
          %vm2188 = vcmask 7168
          %v2189 = vsel %vm2188, %v2186, -inf
          %v2190 = vrot.slane %v2189, 4
          %v2191 = vmax.f32 %v2189, %v2190
          %v2192 = vrot.slane %v2191, 2
          %v2193 = vmax.f32 %v2191, %v2192
          %v2194 = vrot.slane %v2193, 1
          %v2195 = vmax.f32 %v2193, %v2194
          %v2196 = vsel %vm2188, %v2187, -inf
          %v2197 = vrot.slane %v2196, 4
          %v2198 = vmax.f32 %v2196, %v2197
          %v2199 = vrot.slane %v2198, 2
          %v2200 = vmax.f32 %v2198, %v2199
          %v2201 = vrot.slane %v2200, 1
          %v2202 = vmax.f32 %v2200, %v2201
          %v2203 = vsub.f32 %v2186, %v2195
          %v2204 = vsub.f32 %v2187, %v2202
          %v2205 = vmul.f32 %v2203, 1.442695
          %v2206 = vpow.pop %v2205
          %v2207 = vmul.f32 %v2204, 1.442695
          %v2208 = vpow.pop %v2207
          %v2209 = vsel %vm2188, %v2206, 0.0
          %v2210 = vrot.slane %v2209, 4
          %v2211 = vadd.f32 %v2209, %v2210
          %v2212 = vrot.slane %v2211, 2
          %v2213 = vadd.f32 %v2211, %v2212
          %v2214 = vrot.slane %v2213, 1
          %v2215 = vadd.f32 %v2213, %v2214
          %v2216 = vsel %vm2188, %v2208, 0.0
          %v2217 = vrot.slane %v2216, 4
          %v2218 = vadd.f32 %v2216, %v2217
          %v2219 = vrot.slane %v2218, 2
          %v2220 = vadd.f32 %v2218, %v2219
          %v2221 = vrot.slane %v2220, 1
          %v2222 = vadd.f32 %v2220, %v2221
          %v2223 = vrcp.pop %v2215
          %v2224 = vrcp.pop %v2222
          %v2225 = vmul.f32 %v2206, %v2223
          %v2226 = vmul.f32 %v2208, %v2224
          %2228 = vset.pattern.permute.xlu0 0
          %2229 = vperm.xlu0 %2228, %v2225
          %v2230 = vpop.permute.xlu0 %2229
          %2233 = vset.pattern.permute.xlu0 0
          %2234 = vperm.xlu0 %2233, %v2226
          %v2235 = vpop.permute.xlu0 %2234
          %v2237 = vmul.f32 %v2230, %v2164
          %v2238 = vmul.f32 %v2235, %v2165
          %v2239 = vrot.slane %v2237, 4
          %v2240 = vadd.f32 %v2237, %v2239
          %v2241 = vrot.slane %v2240, 2
          %v2242 = vadd.f32 %v2240, %v2241
          %v2243 = vrot.slane %v2242, 1
          %v2244 = vadd.f32 %v2242, %v2243
          %v2245 = vrot.slane %v2238, 4
          %v2246 = vadd.f32 %v2238, %v2245
          %v2247 = vrot.slane %v2246, 2
          %v2248 = vadd.f32 %v2246, %v2247
          %v2249 = vrot.slane %v2248, 1
          %v2250 = vadd.f32 %v2248, %v2249
          %v2251 = vpack.c.bf16 %v2244, %v2244
          %v2252 = vpack.c.bf16 %v2250, %v2250
          %v2253 = vld [vmem:[#allocation15] sm:$0xf]
          %v2254 = vld [vmem:[#allocation15 + $0x4] sm:$0xf]
          %v2255 = vld [vmem:[#allocation15 + $0x8] sm:$0xf]
          %v2256 = vld [vmem:[#allocation15 + $0xc] sm:$0xf]
          %v2257 = vld [vmem:[#allocation15 + $0x10] sm:$0xf]
          %v2258 = vld [vmem:[#allocation15 + $0x14] sm:$0xf]
          %v2259 = vld [vmem:[#allocation15 + $0x18] sm:$0xf]
          %v2260 = vld [vmem:[#allocation15 + $0x1c] sm:$0xf]
          %v2261 = vld [vmem:[#allocation15 + $0x20] sm:$0xf]
          %v2262 = vld [vmem:[#allocation15 + $0x24] sm:$0xf]
          %v2263 = vld [vmem:[#allocation15 + $0x28] sm:$0xf]
          %v2264 = vld [vmem:[#allocation15 + $0x2c] sm:$0xf]
          %v2265 = vld [vmem:[#allocation15 + $0x30] sm:$0xf]
          %v2266 = vld [vmem:[#allocation15 + $0x34] sm:$0xf]
          %v2267 = vld [vmem:[#allocation15 + $0x38] sm:$0xf]
          %v2268 = vld [vmem:[#allocation15 + $0x3c] sm:$0xf]
          %v2269 = vld [vmem:[%s17] sm:$0x1]
          %v2271 = vlaneseq
          %v2272 = vshrl.u32 %v2271, 7
          %v2273 = vsub.s32 0, %v2272
          %v2274 = vrot.slane %v2269, %v2273
          %v2278 = vunpack.c.l.b16 %v2251
          %v2279 = vunpack.c.l.b16 %v2252
          %vm2280 = vcmask 1041409
          %v2281 = vsel %vm2280, %v2279, %v2278
          %v2282 = vpack.c.b16 %v2281, %v2281
          %v2300 = vunpack.c.l.b16 %v2253
          %v2301 = vunpack.c.l.b16 %v2254
          %v2302 = vunpack.c.l.b16 %v2255
          %v2303 = vunpack.c.l.b16 %v2256
          %v2304 = vunpack.c.l.b16 %v2257
          %v2305 = vunpack.c.l.b16 %v2258
          %v2306 = vunpack.c.l.b16 %v2259
          %v2307 = vunpack.c.l.b16 %v2260
          %v2308 = vunpack.c.l.b16 %v2261
          %v2309 = vunpack.c.l.b16 %v2262
          %v2310 = vunpack.c.l.b16 %v2263
          %v2311 = vunpack.c.l.b16 %v2264
          %v2312 = vunpack.c.l.b16 %v2265
          %v2313 = vunpack.c.l.b16 %v2266
          %v2314 = vunpack.c.l.b16 %v2267
          %v2315 = vunpack.c.l.b16 %v2268
          %v2316 = vpack.c.b16 %v2301, %v2300
          %v2317 = vpack.c.b16 %v2303, %v2302
          %v2318 = vpack.c.b16 %v2305, %v2304
          %v2319 = vpack.c.b16 %v2307, %v2306
          %v2320 = vpack.c.b16 %v2309, %v2308
          %v2321 = vpack.c.b16 %v2311, %v2310
          %v2322 = vpack.c.b16 %v2313, %v2312
          %v2323 = vpack.c.b16 %v2315, %v2314
          %2332 = vmatprep.subr.bf16.mxu0 0
          %2333 = vmatpush1.bf16.msra.mxu0 %v2323
          %2334 = vmatprep.subr.bf16.mxu0 0
          %2335 = vmatpush1.bf16.msra.mxu0 %v2322
          %2336 = vmatprep.subr.bf16.mxu0 0
          %2337 = vmatpush1.bf16.msra.mxu0 %v2321
          %2338 = vmatprep.subr.bf16.mxu0 0
          %2339 = vmatpush1.bf16.msra.mxu0 %v2320
          %2340 = vmatprep.subr.bf16.mxu0 0
          %2341 = vmatpush1.bf16.msra.mxu0 %v2319
          %2342 = vmatprep.subr.bf16.mxu0 0
          %2343 = vmatpush1.bf16.msra.mxu0 %v2318
          %2344 = vmatprep.subr.bf16.mxu0 0
          %2345 = vmatpush1.bf16.msra.mxu0 %v2317
          %2346 = vmatprep.subr.bf16.mxu0 0
          %2347 = vmatpush1.bf16.msra.mxu0 %v2316
          %2348 = vmatprep.subr.bf16.mxu0 0
          %2349 = vmatpush2.bf16.msra.mxu0 0
          %2350 = vmatprep.subr.bf16.mxu0 0
          %2351 = vmatpush2.bf16.msra.mxu0 0
          %2352 = vmatprep.subr.bf16.mxu0 0
          %2353 = vmatpush2.bf16.msra.mxu0 0
          %2354 = vmatprep.subr.bf16.mxu0 0
          %2355 = vmatpush2.bf16.msra.mxu0 0
          %2356 = vmatprep.subr.bf16.mxu0 0
          %2357 = vmatpush2.bf16.msra.mxu0 0
          %2358 = vmatprep.subr.bf16.mxu0 0
          %2359 = vmatpush2.bf16.msra.mxu0 0
          %2360 = vmatprep.subr.bf16.mxu0 0
          %2361 = vmatpush2.bf16.msra.mxu0 0
          %2362 = vmatprep.subr.bf16.mxu0 0
          %2363 = vmatpush2.bf16.msra.mxu0 0
          %2364 = vmatprep.mubr.bf16.mxu0 0
          %2365 = vmatmul.mubr.bf16.gmra.mxu0 %v2282
          %v2366 = vpop.f32.mrf.mxu0
          %v2367 = vadd.f32 %v2274, %v2366
          %v2368 = vpop.f32.mrf.mxu0
          %v2369 = vpop.f32.mrf.mxu0
          %v2370 = vpop.f32.mrf.mxu0
          %2371 = vdwg.mxu0
          %2372 = vst [vmem:[#allocation17] sm:$0x3] %v2367
        $region132: #{tpu_custom_call.1} parent=87 // pred_fallthru
          _
        // Predicated region
        $region133: #{tpu_custom_call.1} parent=87 // pred_check
          %p2373 = pneg %p467
        $region134: #{tpu_custom_call.1} parent=87 // pred_check_branch
          %2375 = sbr.rel (%p2373) target = $region136
        $region135: #{tpu_custom_call.1} parent=87 // pred_region
          %s2377 = ssub.s32 32, 32
          %2378 = vsyncadd [#allocation8], %s2377
          %s2380 = sshll.u32 [#allocation17], 4
          %s2381 = int_to_ptr.vmem [resolvable:$true] %s2380
          %2383 = dma.vmem_to_hbm [thread:$0]  %s2381, 32, %s18, [#allocation8]
        $region136: #{tpu_custom_call.1} parent=87 // pred_fallthru
          _
        // Predicated region
        $region137: #{tpu_custom_call.1} parent=87 // pred_check
          %p2384 = pneg %p467
        $region138: #{tpu_custom_call.1} parent=87 // pred_check_branch
          %2386 = sbr.rel (%p2384) target = $region140
        $region139: #{tpu_custom_call.1} parent=87 // pred_region
          %2387 = dma.done [#allocation8], 32
        $region140: #{tpu_custom_call.1} parent=87 // pred_fallthru
          _
      $region88: #{tpu_custom_call.1} parent=5 // pred_fallthru
        _
      %p2388 = scmp.le.s32.totalorder 2, %s37
      // Predicated region
      $region141: #{tpu_custom_call.1} parent=5 // pred_check
        %p2389 = pneg %p2388
      $region142: #{tpu_custom_call.1} parent=5 // pred_check_branch
        %2391 = sbr.rel (%p2389) target = $region144
      $region143: #{tpu_custom_call.1} parent=5 // pred_region
        %s2392 = ssub.s32 %s37, 2
      $region144: #{tpu_custom_call.1} parent=5 // pred_fallthru
        _
    $region6: #{tpu_custom_call.1} parent=1 // loop_footer
      %s41 = sadd.s32 1, %s37
    $region7: #{tpu_custom_call.1} parent=1 // loop_footer_branch
      %36 = sbr.rel target = $region3
    $region8: #{tpu_custom_call.1} parent=1 // loop_exit
      _
    %2393 = vsyncpa [#allocation7], 1
    %s2394 = scalar_lea.sflag [#allocation7], 1
    %2395 = vsyncpa %s2394, 1
    %2396 = vsyncpa [#allocation10], 1
    %s2397 = scalar_lea.sflag [#allocation10], 1
    %2398 = vsyncpa %s2397, 1
    %2399 = vsyncpa [#allocation13], 1
    %s2400 = scalar_lea.sflag [#allocation13], 1
    %2401 = vsyncpa %s2400, 1
    %2402 = vsyncpa [#allocation16], 1
    %2403 = vsyncpa [#allocation8], 1
    %s2404 = scalar_lea.sflag [#allocation8], 1
    %2405 = vsyncpa %s2404, 1

</llo_original>
